<compile_context>
chip_gen: v5e
topology: v5e:2x2
jax: 0.10.0
libtpu: 0.0.40
codegen_flags: <defaults>
</compile_context>

<pallas_src>
import jax
import jax.numpy as jnp
from jax.experimental import pallas as pl
from jax.experimental.pallas import tpu as pltpu

# ----- model sizes (small, consistent with the module's __init__) -----------
B = 2            # batch
N_POINT = 64     # args.tr_max_sample_points
POINT_DIM = 3    # self.point_dim
Z_DIM = 32       # args.zdim
H1 = 64          # encoder hidden 1
H2 = 128         # encoder hidden 2 (global feature size)
HD = 128         # decoder hidden
N_GROUPS = 4     # args.n_groups (unused for loss_type='chamfer')

VMEM = pl.BlockSpec(memory_space=pltpu.MemorySpace.VMEM)


def _softplus(x):
    # numerically-stable softplus (VPU/EUP ops)
    return jnp.maximum(x, 0.0) + jnp.log1p(jnp.exp(-jnp.abs(x)))


# ----------------------------- fused kernel ---------------------------------
def _vae_fused_kernel(xt_ref, epst_ref,
                      w1t_ref, b1c_ref, w2t_ref, b2c_ref,
                      wmt_ref, bmc_ref, wvt_ref, bvc_ref,
                      wd1t_ref, bd1c_ref,
                      wd2tx_ref, wd2ty_ref, wd2tz_ref,
                      bd2cx_ref, bd2cy_ref, bd2cz_ref,
                      xr_ref, kl_ref, nelbo_ref,
                      feat_s, yb_s):
    f32 = jnp.float32

    # ---- encoder: per-point MLP (feature-major: (H, N) tiles) + max-pool ----
    w1t = w1t_ref[...]; b1c = b1c_ref[...]
    w2t = w2t_ref[...]; b2c = b2c_ref[...]
    for b in range(B):                                   # B=2, unrolled at trace time
        xb = xt_ref[b]                                   # (3, N)  lane-dense points
        h1 = jnp.maximum(
            jnp.dot(w1t, xb, preferred_element_type=f32) + b1c, 0.0)   # (H1, N)
        h2 = jnp.maximum(
            jnp.dot(w2t, h1, preferred_element_type=f32) + b2c, 0.0)   # (H2, N)
        feat_s[:, b:b + 1] = jnp.max(h2, axis=1, keepdims=True)        # global max-pool
    feat_t = feat_s[...]                                 # (H2, B)

    # ---- latent heads -------------------------------------------------------
    m_t = jnp.dot(wmt_ref[...], feat_t, preferred_element_type=f32) + bmc_ref[...]
    v_t = _softplus(jnp.dot(wvt_ref[...], feat_t, preferred_element_type=f32)
                    + bvc_ref[...]) + 1e-8               # (Z, B), strictly positive

    # ---- reparameterized sample + decoder MLP (in-kernel, no HBM round-trip)
    z_t = m_t + jnp.sqrt(v_t) * epst_ref[...]            # (Z, B)
    hd_t = jnp.maximum(
        jnp.dot(wd1t_ref[...], z_t, preferred_element_type=f32) + bd1c_ref[...], 0.0)  # (HD, B)
    ycols = (                                            # per-coordinate decoder output
        jnp.dot(wd2tx_ref[...], hd_t, preferred_element_type=f32) + bd2cx_ref[...],
        jnp.dot(wd2ty_ref[...], hd_t, preferred_element_type=f32) + bd2cy_ref[...],
        jnp.dot(wd2tz_ref[...], hd_t, preferred_element_type=f32) + bd2cz_ref[...],
    )                                                    # 3 x (N, B)

    # ---- Chamfer distance per batch, accumulated to a (1,1) scalar ----------
    cd_sum = jnp.zeros((1, 1), f32)
    for b in range(B):
        for d in range(POINT_DIM):                       # assemble y_b as (N, 3)
            yb_s[:, d:d + 1] = ycols[d][:, b:b + 1]
        yb = yb_s[...]                                   # (N, 3)
        xbt = xt_ref[b]                                  # (3, N)
        cross = jnp.dot(yb, xbt, preferred_element_type=f32)      # (N, N)
        yy = jnp.sum(yb * yb, axis=1, keepdims=True)               # (N, 1)
        xx = jnp.sum(xbt * xbt, axis=0, keepdims=True)             # (1, N) sublane reduce
        dmat = jnp.maximum(yy - 2.0 * cross + xx, 0.0)             # clamp tiny negatives
        d_y2x = jnp.min(dmat, axis=1, keepdims=True)               # (N, 1)
        d_x2y = jnp.min(dmat, axis=0, keepdims=True)               # (1, N)
        cd_sum = cd_sum + (jnp.mean(d_y2x, axis=0, keepdims=True)
                           + jnp.mean(d_x2y, axis=1, keepdims=True))

    # ---- KL(N(m,v) || N(0,1)) and final batch means (loss_sum_mean='mean') --
    kl_t = 0.5 * (v_t + m_t * m_t - jnp.log(v_t) - 1.0)            # (Z, B)
    kl_mean = jnp.mean(jnp.sum(kl_t, axis=0, keepdims=True),
                       axis=1, keepdims=True)                       # (1, 1)
    x_reconst = cd_sum * (1.0 / B)                                  # (1, 1)

    xr_ref[...] = x_reconst
    kl_ref[...] = kl_mean
    nelbo_ref[...] = x_reconst + kl_mean


# -------------------- host-side one-time parameter relayout ------------------
def prepare_kernel_params(p):
    """Transpose weights / make column biases / split decoder output weight per
    coordinate so the kernel works on lane-dense feature-major tiles."""
    kp = {
        'w1t': p['enc_w1'].T,  'b1c': p['enc_b1'].reshape(H1, 1),
        'w2t': p['enc_w2'].T,  'b2c': p['enc_b2'].reshape(H2, 1),
        'wmt': p['enc_wm'].T,  'bmc': p['enc_bm'].reshape(Z_DIM, 1),
        'wvt': p['enc_wv'].T,  'bvc': p['enc_bv'].reshape(Z_DIM, 1),
        'wd1t': p['dec_w1'].T, 'bd1c': p['dec_b1'].reshape(HD, 1),
    }
    wd2, bd2 = p['dec_w2'], p['dec_b2']          # (HD, N*3), (1, N*3); flat idx = n*3 + d
    for d, tag in enumerate(('x', 'y', 'z')):
        kp['wd2t' + tag] = wd2[:, d::POINT_DIM].T                    # (N, HD)
        kp['bd2c' + tag] = bd2[0, d::POINT_DIM].reshape(N_POINT, 1)  # (N, 1)
    return kp


# --------------------------------- forward -----------------------------------
@jax.jit
def vae_forward(x, kp, noise_key):
    eps = jax.random.normal(noise_key, (B, Z_DIM), dtype=jnp.float32)
    xt = jnp.transpose(x, (0, 2, 1))             # (B, 3, N): point axis in lanes
    scalar = jax.ShapeDtypeStruct((1, 1), jnp.float32)
    xr, kl, nelbo = pl.pallas_call(
        _vae_fused_kernel,
        out_shape=(scalar, scalar, scalar),
        in_specs=[VMEM] * 18,
        out_specs=(VMEM, VMEM, VMEM),
        scratch_shapes=[pltpu.VMEM((H2, B), jnp.float32),           # feat_t
                        pltpu.VMEM((N_POINT, POINT_DIM), jnp.float32)],  # y_b staging
        compiler_params=pltpu.CompilerParams(vmem_limit_bytes=16 * 1024 * 1024),
    )(xt, eps.T,
      kp['w1t'], kp['b1c'], kp['w2t'], kp['b2c'],
      kp['wmt'], kp['bmc'], kp['wvt'], kp['bvc'],
      kp['wd1t'], kp['bd1c'],
      kp['wd2tx'], kp['wd2ty'], kp['wd2tz'],
      kp['bd2cx'], kp['bd2cy'], kp['bd2cz'])
    return {'nelbo': nelbo[0, 0], 'kl_loss': kl[0, 0], 'x_reconst': xr[0, 0]}


# -------------------------- pure-JAX reference --------------------------------
def vae_forward_ref(x, p, noise_key):
    h1 = jnp.maximum(x @ p['enc_w1'] + p['enc_b1'], 0.0)
    h2 = jnp.maximum(h1 @ p['enc_w2'] + p['enc_b2'], 0.0)
    feat = jnp.max(h2, axis=1)
    m = feat @ p['enc_wm'] + p['enc_bm']
    v = jax.nn.softplus(feat @ p['enc_wv'] + p['enc_bv']) + 1e-8
    eps = jax.random.normal(noise_key, m.shape, dtype=m.dtype)
    z = m + jnp.sqrt(v) * eps
    h = jnp.maximum(z @ p['dec_w1'] + p['dec_b1'], 0.0)
    y = (h @ p['dec_w2'] + p['dec_b2']).reshape(B, N_POINT, POINT_DIM)
    d = (jnp.sum(y * y, axis=2)[:, :, None] - 2.0 * jnp.einsum('bnd,bmd->bnm', y, x)
         + jnp.sum(x * x, axis=2)[:, None, :])
    cd = jnp.mean(jnp.min(d, axis=2), axis=1) + jnp.mean(jnp.min(d, axis=1), axis=1)
    kl = 0.5 * jnp.sum(v + m * m - jnp.log(v) - 1.0, axis=1)
    x_reconst = jnp.mean(cd)
    kl_loss = jnp.mean(kl)
    return {'nelbo': x_reconst + kl_loss, 'kl_loss': kl_loss, 'x_reconst': x_reconst}


# ------------------------------ parameters ------------------------------------
def init_params(key):
    ks = jax.random.split(key, 6)

    def w(k, shape, scale=0.1):
        return scale * jax.random.normal(k, shape, jnp.float32)

    return {
        'enc_w1': w(ks[0], (POINT_DIM, H1)),
        'enc_b1': jnp.zeros((1, H1), jnp.float32),
        'enc_w2': w(ks[1], (H1, H2)),
        'enc_b2': jnp.zeros((1, H2), jnp.float32),
        'enc_wm': w(ks[2], (H2, Z_DIM)),
        'enc_bm': jnp.zeros((1, Z_DIM), jnp.float32),
        'enc_wv': w(ks[3], (H2, Z_DIM)),
        'enc_bv': jnp.zeros((1, Z_DIM), jnp.float32),
        'dec_w1': w(ks[4], (Z_DIM, HD)),
        'dec_b1': jnp.zeros((1, HD), jnp.float32),
        'dec_w2': w(ks[5], (HD, N_POINT * POINT_DIM)),
        'dec_b2': jnp.zeros((1, N_POINT * POINT_DIM), jnp.float32),
    }


if __name__ == "__main__":
    root = jax.random.PRNGKey(0)
    pkey, xkey, nkey = jax.random.split(root, 3)
    params = init_params(pkey)
    kparams = prepare_kernel_params(params)     # one-time host-side relayout
    x = jax.random.normal(xkey, (B, N_POINT, POINT_DIM), jnp.float32)

    out = vae_forward(x, kparams, nkey)
    jax.block_until_ready(out)

    ref = vae_forward_ref(x, params, nkey)
    for k in ('nelbo', 'kl_loss', 'x_reconst'):
        assert jnp.allclose(out[k], ref[k], rtol=1e-2, atol=1e-3), (k, out[k], ref[k])

    print("KERNEL_OK")
</pallas_src>

<mosaic_0001>
module attributes {stable_mosaic.version = 11 : i64} {
  func.func @_vae_fused_kernel(%arg0: memref<2x3x64xf32, #tpu.memory_space<vmem>>, %arg1: memref<32x2xf32, #tpu.memory_space<vmem>>, %arg2: memref<64x3xf32, #tpu.memory_space<vmem>>, %arg3: memref<64x1xf32, #tpu.memory_space<vmem>>, %arg4: memref<128x64xf32, #tpu.memory_space<vmem>>, %arg5: memref<128x1xf32, #tpu.memory_space<vmem>>, %arg6: memref<32x128xf32, #tpu.memory_space<vmem>>, %arg7: memref<32x1xf32, #tpu.memory_space<vmem>>, %arg8: memref<32x128xf32, #tpu.memory_space<vmem>>, %arg9: memref<32x1xf32, #tpu.memory_space<vmem>>, %arg10: memref<128x32xf32, #tpu.memory_space<vmem>>, %arg11: memref<128x1xf32, #tpu.memory_space<vmem>>, %arg12: memref<64x128xf32, #tpu.memory_space<vmem>>, %arg13: memref<64x128xf32, #tpu.memory_space<vmem>>, %arg14: memref<64x128xf32, #tpu.memory_space<vmem>>, %arg15: memref<64x1xf32, #tpu.memory_space<vmem>>, %arg16: memref<64x1xf32, #tpu.memory_space<vmem>>, %arg17: memref<64x1xf32, #tpu.memory_space<vmem>>, %arg18: memref<1x1xf32, #tpu.memory_space<vmem>>, %arg19: memref<1x1xf32, #tpu.memory_space<vmem>>, %arg20: memref<1x1xf32, #tpu.memory_space<vmem>>, %arg21: memref<128x2xf32, #tpu.memory_space<vmem>>, %arg22: memref<64x3xf32, #tpu.memory_space<vmem>>) attributes {dimension_semantics = [], scalar_prefetch = 0 : i64, scratch_operands = 2 : i64, tpu.core_type = #tpu.core_type<tc>} {
    %c0 = arith.constant 0 : index
    %c0_0 = arith.constant 0 : index
    %0 = vector.load %arg2[%c0, %c0_0] : memref<64x3xf32, #tpu.memory_space<vmem>>, vector<64x3xf32>
    %c0_1 = arith.constant 0 : index
    %c0_2 = arith.constant 0 : index
    %1 = vector.load %arg3[%c0_1, %c0_2] : memref<64x1xf32, #tpu.memory_space<vmem>>, vector<64x1xf32>
    %c0_3 = arith.constant 0 : index
    %c0_4 = arith.constant 0 : index
    %2 = vector.load %arg4[%c0_3, %c0_4] : memref<128x64xf32, #tpu.memory_space<vmem>>, vector<128x64xf32>
    %c0_5 = arith.constant 0 : index
    %c0_6 = arith.constant 0 : index
    %3 = vector.load %arg5[%c0_5, %c0_6] : memref<128x1xf32, #tpu.memory_space<vmem>>, vector<128x1xf32>
    %c0_7 = arith.constant 0 : index
    %c0_8 = arith.constant 0 : index
    %c0_9 = arith.constant 0 : index
    %4 = vector.load %arg0[%c0_7, %c0_8, %c0_9] : memref<2x3x64xf32, #tpu.memory_space<vmem>>, vector<1x3x64xf32>
    %5 = vector.shape_cast %4 : vector<1x3x64xf32> to vector<3x64xf32>
    %cst = arith.constant dense<0.000000e+00> : vector<64x64xf32>
    %6 = tpu.matmul %0, %5, %cst {dimension_numbers = #tpu.dot_dimension_numbers<[1], [0], [0], [1], [0, 0, 1, 1], [], []>} : vector<64x3xf32>, vector<3x64xf32>, vector<64x64xf32> -> vector<64x64xf32>
    %7 = vector.broadcast %1 : vector<64x1xf32> to vector<64x64xf32>
    %8 = arith.addf %6, %7 : vector<64x64xf32>
    %cst_10 = arith.constant 0.000000e+00 : f32
    %9 = vector.broadcast %cst_10 : f32 to vector<64x64xf32>
    %10 = arith.maximumf %8, %9 : vector<64x64xf32>
    %cst_11 = arith.constant dense<0.000000e+00> : vector<128x64xf32>
    %11 = tpu.matmul %2, %10, %cst_11 {dimension_numbers = #tpu.dot_dimension_numbers<[1], [0], [0], [1], [0, 0, 1, 1], [], []>} : vector<128x64xf32>, vector<64x64xf32>, vector<128x64xf32> -> vector<128x64xf32>
    %12 = vector.broadcast %3 : vector<128x1xf32> to vector<128x64xf32>
    %13 = arith.addf %11, %12 : vector<128x64xf32>
    %cst_12 = arith.constant 0.000000e+00 : f32
    %14 = vector.broadcast %cst_12 : f32 to vector<128x64xf32>
    %15 = arith.maximumf %13, %14 : vector<128x64xf32>
    %cst_13 = arith.constant dense<0xFF800000> : vector<128xf32>
    %16 = vector.multi_reduction <maximumf>, %15, %cst_13 [1] : vector<128x64xf32> to vector<128xf32>
    %17 = vector.shape_cast %16 : vector<128xf32> to vector<128x1xf32>
    %c0_14 = arith.constant 0 : index
    %c0_15 = arith.constant 0 : index
    %18 = vector.load %arg21[%c0_14, %c0_15] : memref<128x2xf32, #tpu.memory_space<vmem>>, vector<128x1xf32>
    tpu.vector_store %arg21[%c0_14, %c0_15], %17 {strides = array<i32>} : memref<128x2xf32, #tpu.memory_space<vmem>>, vector<128x1xf32>,
    %c1 = arith.constant 1 : index
    %c0_16 = arith.constant 0 : index
    %c0_17 = arith.constant 0 : index
    %19 = vector.load %arg0[%c1, %c0_16, %c0_17] : memref<2x3x64xf32, #tpu.memory_space<vmem>>, vector<1x3x64xf32>
    %20 = vector.shape_cast %19 : vector<1x3x64xf32> to vector<3x64xf32>
    %cst_18 = arith.constant dense<0.000000e+00> : vector<64x64xf32>
    %21 = tpu.matmul %0, %20, %cst_18 {dimension_numbers = #tpu.dot_dimension_numbers<[1], [0], [0], [1], [0, 0, 1, 1], [], []>} : vector<64x3xf32>, vector<3x64xf32>, vector<64x64xf32> -> vector<64x64xf32>
    %22 = vector.broadcast %1 : vector<64x1xf32> to vector<64x64xf32>
    %23 = arith.addf %21, %22 : vector<64x64xf32>
    %cst_19 = arith.constant 0.000000e+00 : f32
    %24 = vector.broadcast %cst_19 : f32 to vector<64x64xf32>
    %25 = arith.maximumf %23, %24 : vector<64x64xf32>
    %cst_20 = arith.constant dense<0.000000e+00> : vector<128x64xf32>
    %26 = tpu.matmul %2, %25, %cst_20 {dimension_numbers = #tpu.dot_dimension_numbers<[1], [0], [0], [1], [0, 0, 1, 1], [], []>} : vector<128x64xf32>, vector<64x64xf32>, vector<128x64xf32> -> vector<128x64xf32>
    %27 = vector.broadcast %3 : vector<128x1xf32> to vector<128x64xf32>
    %28 = arith.addf %26, %27 : vector<128x64xf32>
    %cst_21 = arith.constant 0.000000e+00 : f32
    %29 = vector.broadcast %cst_21 : f32 to vector<128x64xf32>
    %30 = arith.maximumf %28, %29 : vector<128x64xf32>
    %cst_22 = arith.constant dense<0xFF800000> : vector<128xf32>
    %31 = vector.multi_reduction <maximumf>, %30, %cst_22 [1] : vector<128x64xf32> to vector<128xf32>
    %32 = vector.shape_cast %31 : vector<128xf32> to vector<128x1xf32>
    %c0_23 = arith.constant 0 : index
    %c1_24 = arith.constant 1 : index
    %33 = vector.load %arg21[%c0_23, %c1_24] : memref<128x2xf32, #tpu.memory_space<vmem>>, vector<128x1xf32>
    tpu.vector_store %arg21[%c0_23, %c1_24], %32 {strides = array<i32>} : memref<128x2xf32, #tpu.memory_space<vmem>>, vector<128x1xf32>,
    %c0_25 = arith.constant 0 : index
    %c0_26 = arith.constant 0 : index
    %34 = vector.load %arg21[%c0_25, %c0_26] : memref<128x2xf32, #tpu.memory_space<vmem>>, vector<128x2xf32>
    %c0_27 = arith.constant 0 : index
    %c0_28 = arith.constant 0 : index
    %35 = vector.load %arg6[%c0_27, %c0_28] : memref<32x128xf32, #tpu.memory_space<vmem>>, vector<32x128xf32>
    %cst_29 = arith.constant dense<0.000000e+00> : vector<32x2xf32>
    %36 = tpu.matmul %35, %34, %cst_29 {dimension_numbers = #tpu.dot_dimension_numbers<[1], [0], [0], [1], [0, 0, 1, 1], [], []>} : vector<32x128xf32>, vector<128x2xf32>, vector<32x2xf32> -> vector<32x2xf32>
    %c0_30 = arith.constant 0 : index
    %c0_31 = arith.constant 0 : index
    %37 = vector.load %arg7[%c0_30, %c0_31] : memref<32x1xf32, #tpu.memory_space<vmem>>, vector<32x1xf32>
    %38 = vector.broadcast %37 : vector<32x1xf32> to vector<32x2xf32>
    %39 = arith.addf %36, %38 : vector<32x2xf32>
    %c0_32 = arith.constant 0 : index
    %c0_33 = arith.constant 0 : index
    %40 = vector.load %arg8[%c0_32, %c0_33] : memref<32x128xf32, #tpu.memory_space<vmem>>, vector<32x128xf32>
    %cst_34 = arith.constant dense<0.000000e+00> : vector<32x2xf32>
    %41 = tpu.matmul %40, %34, %cst_34 {dimension_numbers = #tpu.dot_dimension_numbers<[1], [0], [0], [1], [0, 0, 1, 1], [], []>} : vector<32x128xf32>, vector<128x2xf32>, vector<32x2xf32> -> vector<32x2xf32>
    %c0_35 = arith.constant 0 : index
    %c0_36 = arith.constant 0 : index
    %42 = vector.load %arg9[%c0_35, %c0_36] : memref<32x1xf32, #tpu.memory_space<vmem>>, vector<32x1xf32>
    %43 = vector.broadcast %42 : vector<32x1xf32> to vector<32x2xf32>
    %44 = arith.addf %41, %43 : vector<32x2xf32>
    %cst_37 = arith.constant 0.000000e+00 : f32
    %45 = vector.broadcast %cst_37 : f32 to vector<32x2xf32>
    %46 = arith.maximumf %44, %45 : vector<32x2xf32>
    %47 = math.absf %44 : vector<32x2xf32>
    %cst_38 = arith.constant 0.000000e+00 : f32
    %48 = vector.broadcast %cst_38 : f32 to vector<32x2xf32>
    %49 = arith.subf %48, %47 : vector<32x2xf32>
    %50 = math.exp %49 : vector<32x2xf32>
    %51 = math.log1p %50 : vector<32x2xf32>
    %52 = arith.addf %46, %51 : vector<32x2xf32>
    %cst_39 = arith.constant 9.99999993E-9 : f32
    %53 = vector.broadcast %cst_39 : f32 to vector<32x2xf32>
    %54 = arith.addf %52, %53 : vector<32x2xf32>
    %55 = math.sqrt %54 : vector<32x2xf32>
    %c0_40 = arith.constant 0 : index
    %c0_41 = arith.constant 0 : index
    %56 = vector.load %arg1[%c0_40, %c0_41] : memref<32x2xf32, #tpu.memory_space<vmem>>, vector<32x2xf32>
    %57 = arith.mulf %55, %56 : vector<32x2xf32>
    %58 = arith.addf %39, %57 : vector<32x2xf32>
    %c0_42 = arith.constant 0 : index
    %c0_43 = arith.constant 0 : index
    %59 = vector.load %arg10[%c0_42, %c0_43] : memref<128x32xf32, #tpu.memory_space<vmem>>, vector<128x32xf32>
    %cst_44 = arith.constant dense<0.000000e+00> : vector<128x2xf32>
    %60 = tpu.matmul %59, %58, %cst_44 {dimension_numbers = #tpu.dot_dimension_numbers<[1], [0], [0], [1], [0, 0, 1, 1], [], []>} : vector<128x32xf32>, vector<32x2xf32>, vector<128x2xf32> -> vector<128x2xf32>
    %c0_45 = arith.constant 0 : index
    %c0_46 = arith.constant 0 : index
    %61 = vector.load %arg11[%c0_45, %c0_46] : memref<128x1xf32, #tpu.memory_space<vmem>>, vector<128x1xf32>
    %62 = vector.broadcast %61 : vector<128x1xf32> to vector<128x2xf32>
    %63 = arith.addf %60, %62 : vector<128x2xf32>
    %cst_47 = arith.constant 0.000000e+00 : f32
    %64 = vector.broadcast %cst_47 : f32 to vector<128x2xf32>
    %65 = arith.maximumf %63, %64 : vector<128x2xf32>
    %c0_48 = arith.constant 0 : index
    %c0_49 = arith.constant 0 : index
    %66 = vector.load %arg12[%c0_48, %c0_49] : memref<64x128xf32, #tpu.memory_space<vmem>>, vector<64x128xf32>
    %cst_50 = arith.constant dense<0.000000e+00> : vector<64x2xf32>
    %67 = tpu.matmul %66, %65, %cst_50 {dimension_numbers = #tpu.dot_dimension_numbers<[1], [0], [0], [1], [0, 0, 1, 1], [], []>} : vector<64x128xf32>, vector<128x2xf32>, vector<64x2xf32> -> vector<64x2xf32>
    %c0_51 = arith.constant 0 : index
    %c0_52 = arith.constant 0 : index
    %68 = vector.load %arg15[%c0_51, %c0_52] : memref<64x1xf32, #tpu.memory_space<vmem>>, vector<64x1xf32>
    %69 = vector.broadcast %68 : vector<64x1xf32> to vector<64x2xf32>
    %70 = arith.addf %67, %69 : vector<64x2xf32>
    %c0_53 = arith.constant 0 : index
    %c0_54 = arith.constant 0 : index
    %71 = vector.load %arg13[%c0_53, %c0_54] : memref<64x128xf32, #tpu.memory_space<vmem>>, vector<64x128xf32>
    %cst_55 = arith.constant dense<0.000000e+00> : vector<64x2xf32>
    %72 = tpu.matmul %71, %65, %cst_55 {dimension_numbers = #tpu.dot_dimension_numbers<[1], [0], [0], [1], [0, 0, 1, 1], [], []>} : vector<64x128xf32>, vector<128x2xf32>, vector<64x2xf32> -> vector<64x2xf32>
    %c0_56 = arith.constant 0 : index
    %c0_57 = arith.constant 0 : index
    %73 = vector.load %arg16[%c0_56, %c0_57] : memref<64x1xf32, #tpu.memory_space<vmem>>, vector<64x1xf32>
    %74 = vector.broadcast %73 : vector<64x1xf32> to vector<64x2xf32>
    %75 = arith.addf %72, %74 : vector<64x2xf32>
    %c0_58 = arith.constant 0 : index
    %c0_59 = arith.constant 0 : index
    %76 = vector.load %arg14[%c0_58, %c0_59] : memref<64x128xf32, #tpu.memory_space<vmem>>, vector<64x128xf32>
    %cst_60 = arith.constant dense<0.000000e+00> : vector<64x2xf32>
    %77 = tpu.matmul %76, %65, %cst_60 {dimension_numbers = #tpu.dot_dimension_numbers<[1], [0], [0], [1], [0, 0, 1, 1], [], []>} : vector<64x128xf32>, vector<128x2xf32>, vector<64x2xf32> -> vector<64x2xf32>
    %c0_61 = arith.constant 0 : index
    %c0_62 = arith.constant 0 : index
    %78 = vector.load %arg17[%c0_61, %c0_62] : memref<64x1xf32, #tpu.memory_space<vmem>>, vector<64x1xf32>
    %79 = vector.broadcast %78 : vector<64x1xf32> to vector<64x2xf32>
    %80 = arith.addf %77, %79 : vector<64x2xf32>
    %cst_63 = arith.constant 0.000000e+00 : f32
    %81 = vector.broadcast %cst_63 : f32 to vector<1x1xf32>
    %82 = vector.extract_strided_slice %70 {offsets = [0, 0], sizes = [64, 1], strides = [1, 1]} : vector<64x2xf32> to vector<64x1xf32>
    %c0_64 = arith.constant 0 : index
    %c0_65 = arith.constant 0 : index
    %83 = vector.load %arg22[%c0_64, %c0_65] : memref<64x3xf32, #tpu.memory_space<vmem>>, vector<64x1xf32>
    tpu.vector_store %arg22[%c0_64, %c0_65], %82 {strides = array<i32>} : memref<64x3xf32, #tpu.memory_space<vmem>>, vector<64x1xf32>,
    %84 = vector.extract_strided_slice %75 {offsets = [0, 0], sizes = [64, 1], strides = [1, 1]} : vector<64x2xf32> to vector<64x1xf32>
    %c0_66 = arith.constant 0 : index
    %c1_67 = arith.constant 1 : index
    %85 = vector.load %arg22[%c0_66, %c1_67] : memref<64x3xf32, #tpu.memory_space<vmem>>, vector<64x1xf32>
    tpu.vector_store %arg22[%c0_66, %c1_67], %84 {strides = array<i32>} : memref<64x3xf32, #tpu.memory_space<vmem>>, vector<64x1xf32>,
    %86 = vector.extract_strided_slice %80 {offsets = [0, 0], sizes = [64, 1], strides = [1, 1]} : vector<64x2xf32> to vector<64x1xf32>
    %c0_68 = arith.constant 0 : index
    %c2 = arith.constant 2 : index
    %87 = vector.load %arg22[%c0_68, %c2] : memref<64x3xf32, #tpu.memory_space<vmem>>, vector<64x1xf32>
    tpu.vector_store %arg22[%c0_68, %c2], %86 {strides = array<i32>} : memref<64x3xf32, #tpu.memory_space<vmem>>, vector<64x1xf32>,
    %c0_69 = arith.constant 0 : index
    %c0_70 = arith.constant 0 : index
    %88 = vector.load %arg22[%c0_69, %c0_70] : memref<64x3xf32, #tpu.memory_space<vmem>>, vector<64x3xf32>
    %c0_71 = arith.constant 0 : index
    %c0_72 = arith.constant 0 : index
    %c0_73 = arith.constant 0 : index
    %89 = vector.load %arg0[%c0_71, %c0_72, %c0_73] : memref<2x3x64xf32, #tpu.memory_space<vmem>>, vector<1x3x64xf32>
    %90 = vector.shape_cast %89 : vector<1x3x64xf32> to vector<3x64xf32>
    %cst_74 = arith.constant dense<0.000000e+00> : vector<64x64xf32>
    %91 = tpu.matmul %88, %90, %cst_74 {dimension_numbers = #tpu.dot_dimension_numbers<[1], [0], [0], [1], [0, 0, 1, 1], [], []>} : vector<64x3xf32>, vector<3x64xf32>, vector<64x64xf32> -> vector<64x64xf32>
    %92 = arith.mulf %88, %88 : vector<64x3xf32>
    %cst_75 = arith.constant dense<0.000000e+00> : vector<64xf32>
    %93 = vector.multi_reduction <add>, %92, %cst_75 [1] : vector<64x3xf32> to vector<64xf32>
    %94 = vector.shape_cast %93 : vector<64xf32> to vector<64x1xf32>
    %95 = arith.mulf %90, %90 : vector<3x64xf32>
    %cst_76 = arith.constant dense<0.000000e+00> : vector<64xf32>
    %96 = vector.multi_reduction <add>, %95, %cst_76 [0] : vector<3x64xf32> to vector<64xf32>
    %97 = vector.shape_cast %96 : vector<64xf32> to vector<1x64xf32>
    %cst_77 = arith.constant 2.000000e+00 : f32
    %98 = vector.broadcast %cst_77 : f32 to vector<64x64xf32>
    %99 = arith.mulf %98, %91 : vector<64x64xf32>
    %100 = vector.broadcast %94 : vector<64x1xf32> to vector<64x64xf32>
    %101 = arith.subf %100, %99 : vector<64x64xf32>
    %102 = vector.broadcast %97 : vector<1x64xf32> to vector<64x64xf32>
    %103 = arith.addf %101, %102 : vector<64x64xf32>
    %cst_78 = arith.constant 0.000000e+00 : f32
    %104 = vector.broadcast %cst_78 : f32 to vector<64x64xf32>
    %105 = arith.maximumf %103, %104 : vector<64x64xf32>
    %cst_79 = arith.constant dense<0x7F800000> : vector<64xf32>
    %106 = vector.multi_reduction <minimumf>, %105, %cst_79 [1] : vector<64x64xf32> to vector<64xf32>
    %107 = vector.shape_cast %106 : vector<64xf32> to vector<64x1xf32>
    %cst_80 = arith.constant dense<0x7F800000> : vector<64xf32>
    %108 = vector.multi_reduction <minimumf>, %105, %cst_80 [0] : vector<64x64xf32> to vector<64xf32>
    %109 = vector.shape_cast %108 : vector<64xf32> to vector<1x64xf32>
    %cst_81 = arith.constant dense<0.000000e+00> : vector<1xf32>
    %110 = vector.multi_reduction <add>, %107, %cst_81 [0] : vector<64x1xf32> to vector<1xf32>
    %111 = vector.shape_cast %110 : vector<1xf32> to vector<1x1xf32>
    %cst_82 = arith.constant 6.400000e+01 : f32
    %112 = vector.broadcast %cst_82 : f32 to vector<1x1xf32>
    %113 = arith.divf %111, %112 : vector<1x1xf32>
    %cst_83 = arith.constant dense<0.000000e+00> : vector<1xf32>
    %114 = vector.multi_reduction <add>, %109, %cst_83 [1] : vector<1x64xf32> to vector<1xf32>
    %115 = vector.shape_cast %114 : vector<1xf32> to vector<1x1xf32>
    %cst_84 = arith.constant 6.400000e+01 : f32
    %116 = vector.broadcast %cst_84 : f32 to vector<1x1xf32>
    %117 = arith.divf %115, %116 : vector<1x1xf32>
    %118 = arith.addf %113, %117 : vector<1x1xf32>
    %119 = arith.addf %81, %118 : vector<1x1xf32>
    %120 = vector.extract_strided_slice %70 {offsets = [0, 1], sizes = [64, 1], strides = [1, 1]} : vector<64x2xf32> to vector<64x1xf32>
    %c0_85 = arith.constant 0 : index
    %c0_86 = arith.constant 0 : index
    %121 = vector.load %arg22[%c0_85, %c0_86] : memref<64x3xf32, #tpu.memory_space<vmem>>, vector<64x1xf32>
    tpu.vector_store %arg22[%c0_85, %c0_86], %120 {strides = array<i32>} : memref<64x3xf32, #tpu.memory_space<vmem>>, vector<64x1xf32>,
    %122 = vector.extract_strided_slice %75 {offsets = [0, 1], sizes = [64, 1], strides = [1, 1]} : vector<64x2xf32> to vector<64x1xf32>
    %c0_87 = arith.constant 0 : index
    %c1_88 = arith.constant 1 : index
    %123 = vector.load %arg22[%c0_87, %c1_88] : memref<64x3xf32, #tpu.memory_space<vmem>>, vector<64x1xf32>
    tpu.vector_store %arg22[%c0_87, %c1_88], %122 {strides = array<i32>} : memref<64x3xf32, #tpu.memory_space<vmem>>, vector<64x1xf32>,
    %124 = vector.extract_strided_slice %80 {offsets = [0, 1], sizes = [64, 1], strides = [1, 1]} : vector<64x2xf32> to vector<64x1xf32>
    %c0_89 = arith.constant 0 : index
    %c2_90 = arith.constant 2 : index
    %125 = vector.load %arg22[%c0_89, %c2_90] : memref<64x3xf32, #tpu.memory_space<vmem>>, vector<64x1xf32>
    tpu.vector_store %arg22[%c0_89, %c2_90], %124 {strides = array<i32>} : memref<64x3xf32, #tpu.memory_space<vmem>>, vector<64x1xf32>,
    %c0_91 = arith.constant 0 : index
    %c0_92 = arith.constant 0 : index
    %126 = vector.load %arg22[%c0_91, %c0_92] : memref<64x3xf32, #tpu.memory_space<vmem>>, vector<64x3xf32>
    %c1_93 = arith.constant 1 : index
    %c0_94 = arith.constant 0 : index
    %c0_95 = arith.constant 0 : index
    %127 = vector.load %arg0[%c1_93, %c0_94, %c0_95] : memref<2x3x64xf32, #tpu.memory_space<vmem>>, vector<1x3x64xf32>
    %128 = vector.shape_cast %127 : vector<1x3x64xf32> to vector<3x64xf32>
    %cst_96 = arith.constant dense<0.000000e+00> : vector<64x64xf32>
    %129 = tpu.matmul %126, %128, %cst_96 {dimension_numbers = #tpu.dot_dimension_numbers<[1], [0], [0], [1], [0, 0, 1, 1], [], []>} : vector<64x3xf32>, vector<3x64xf32>, vector<64x64xf32> -> vector<64x64xf32>
    %130 = arith.mulf %126, %126 : vector<64x3xf32>
    %cst_97 = arith.constant dense<0.000000e+00> : vector<64xf32>
    %131 = vector.multi_reduction <add>, %130, %cst_97 [1] : vector<64x3xf32> to vector<64xf32>
    %132 = vector.shape_cast %131 : vector<64xf32> to vector<64x1xf32>
    %133 = arith.mulf %128, %128 : vector<3x64xf32>
    %cst_98 = arith.constant dense<0.000000e+00> : vector<64xf32>
    %134 = vector.multi_reduction <add>, %133, %cst_98 [0] : vector<3x64xf32> to vector<64xf32>
    %135 = vector.shape_cast %134 : vector<64xf32> to vector<1x64xf32>
    %cst_99 = arith.constant 2.000000e+00 : f32
    %136 = vector.broadcast %cst_99 : f32 to vector<64x64xf32>
    %137 = arith.mulf %136, %129 : vector<64x64xf32>
    %138 = vector.broadcast %132 : vector<64x1xf32> to vector<64x64xf32>
    %139 = arith.subf %138, %137 : vector<64x64xf32>
    %140 = vector.broadcast %135 : vector<1x64xf32> to vector<64x64xf32>
    %141 = arith.addf %139, %140 : vector<64x64xf32>
    %cst_100 = arith.constant 0.000000e+00 : f32
    %142 = vector.broadcast %cst_100 : f32 to vector<64x64xf32>
    %143 = arith.maximumf %141, %142 : vector<64x64xf32>
    %cst_101 = arith.constant dense<0x7F800000> : vector<64xf32>
    %144 = vector.multi_reduction <minimumf>, %143, %cst_101 [1] : vector<64x64xf32> to vector<64xf32>
    %145 = vector.shape_cast %144 : vector<64xf32> to vector<64x1xf32>
    %cst_102 = arith.constant dense<0x7F800000> : vector<64xf32>
    %146 = vector.multi_reduction <minimumf>, %143, %cst_102 [0] : vector<64x64xf32> to vector<64xf32>
    %147 = vector.shape_cast %146 : vector<64xf32> to vector<1x64xf32>
    %cst_103 = arith.constant dense<0.000000e+00> : vector<1xf32>
    %148 = vector.multi_reduction <add>, %145, %cst_103 [0] : vector<64x1xf32> to vector<1xf32>
    %149 = vector.shape_cast %148 : vector<1xf32> to vector<1x1xf32>
    %cst_104 = arith.constant 6.400000e+01 : f32
    %150 = vector.broadcast %cst_104 : f32 to vector<1x1xf32>
    %151 = arith.divf %149, %150 : vector<1x1xf32>
    %cst_105 = arith.constant dense<0.000000e+00> : vector<1xf32>
    %152 = vector.multi_reduction <add>, %147, %cst_105 [1] : vector<1x64xf32> to vector<1xf32>
    %153 = vector.shape_cast %152 : vector<1xf32> to vector<1x1xf32>
    %cst_106 = arith.constant 6.400000e+01 : f32
    %154 = vector.broadcast %cst_106 : f32 to vector<1x1xf32>
    %155 = arith.divf %153, %154 : vector<1x1xf32>
    %156 = arith.addf %151, %155 : vector<1x1xf32>
    %157 = arith.addf %119, %156 : vector<1x1xf32>
    %158 = arith.mulf %39, %39 : vector<32x2xf32>
    %159 = arith.addf %54, %158 : vector<32x2xf32>
    %160 = math.log %54 : vector<32x2xf32>
    %161 = arith.subf %159, %160 : vector<32x2xf32>
    %cst_107 = arith.constant 1.000000e+00 : f32
    %162 = vector.broadcast %cst_107 : f32 to vector<32x2xf32>
    %163 = arith.subf %161, %162 : vector<32x2xf32>
    %cst_108 = arith.constant 5.000000e-01 : f32
    %164 = vector.broadcast %cst_108 : f32 to vector<32x2xf32>
    %165 = arith.mulf %164, %163 : vector<32x2xf32>
    %cst_109 = arith.constant dense<0.000000e+00> : vector<2xf32>
    %166 = vector.multi_reduction <add>, %165, %cst_109 [0] : vector<32x2xf32> to vector<2xf32>
    %167 = vector.shape_cast %166 : vector<2xf32> to vector<1x2xf32>
    %cst_110 = arith.constant dense<0.000000e+00> : vector<1xf32>
    %168 = vector.multi_reduction <add>, %167, %cst_110 [1] : vector<1x2xf32> to vector<1xf32>
    %169 = vector.shape_cast %168 : vector<1xf32> to vector<1x1xf32>
    %cst_111 = arith.constant 2.000000e+00 : f32
    %170 = vector.broadcast %cst_111 : f32 to vector<1x1xf32>
    %171 = arith.divf %169, %170 : vector<1x1xf32>
    %cst_112 = arith.constant 5.000000e-01 : f32
    %172 = vector.broadcast %cst_112 : f32 to vector<1x1xf32>
    %173 = arith.mulf %157, %172 : vector<1x1xf32>
    %c0_113 = arith.constant 0 : index
    %c0_114 = arith.constant 0 : index
    %174 = vector.load %arg18[%c0_113, %c0_114] : memref<1x1xf32, #tpu.memory_space<vmem>>, vector<1x1xf32>
    tpu.vector_store %arg18[%c0_113, %c0_114], %173 {strides = array<i32>} : memref<1x1xf32, #tpu.memory_space<vmem>>, vector<1x1xf32>,
    %c0_115 = arith.constant 0 : index
    %c0_116 = arith.constant 0 : index
    %175 = vector.load %arg19[%c0_115, %c0_116] : memref<1x1xf32, #tpu.memory_space<vmem>>, vector<1x1xf32>
    tpu.vector_store %arg19[%c0_115, %c0_116], %171 {strides = array<i32>} : memref<1x1xf32, #tpu.memory_space<vmem>>, vector<1x1xf32>,
    %176 = arith.addf %173, %171 : vector<1x1xf32>
    %c0_117 = arith.constant 0 : index
    %c0_118 = arith.constant 0 : index
    %177 = vector.load %arg20[%c0_117, %c0_118] : memref<1x1xf32, #tpu.memory_space<vmem>>, vector<1x1xf32>
    tpu.vector_store %arg20[%c0_117, %c0_118], %176 {strides = array<i32>} : memref<1x1xf32, #tpu.memory_space<vmem>>, vector<1x1xf32>,
    return
  }
}

</mosaic_0001>

<llo_original>
// kernel: vae_forward.1
$region0: #{vae_forward.1}
  #allocation0 [shape = 'u32[]', space=smem, size = 0x4, offset = 0x4, fixed_abs, tag = 'smem constant byte address 0x4 - core index']
  #allocation1 [shape = 'u32[72,128]{1,0:T(1,128)}', space=vmem, size = 0x9000, scoped, tag = 'internal scratch']
  #allocation2 [shape = 'f32[128,2]{1,0:T(8,128)}', space=vmem, size = 0x10000, scoped, tag = 'scratch operand']
  #allocation3 [shape = 'f32[64,3]{1,0:T(8,128)}', space=vmem, size = 0x8000, scoped, tag = 'scratch operand']
  %s0 = inlined_call_operand.vmem [shape: f32[2,3,64], index: 0, kind: input, shape index: {}]
  %s1 = inlined_call_operand.vmem [shape: f32[32,2], index: 1, kind: input, shape index: {}]
  %s2 = inlined_call_operand.vmem [shape: f32[64,3], index: 2, kind: input, shape index: {}]
  %s3 = inlined_call_operand.vmem [shape: f32[64,1], index: 3, kind: input, shape index: {}]
  %s4 = inlined_call_operand.vmem [shape: f32[128,64], index: 4, kind: input, shape index: {}]
  %s5 = inlined_call_operand.vmem [shape: f32[128,1], index: 5, kind: input, shape index: {}]
  %s6 = inlined_call_operand.vmem [shape: f32[32,128], index: 6, kind: input, shape index: {}]
  %s7 = inlined_call_operand.vmem [shape: f32[32,1], index: 7, kind: input, shape index: {}]
  %s8 = inlined_call_operand.vmem [shape: f32[32,128], index: 8, kind: input, shape index: {}]
  %s9 = inlined_call_operand.vmem [shape: f32[32,1], index: 9, kind: input, shape index: {}]
  %s10 = inlined_call_operand.vmem [shape: f32[128,32], index: 10, kind: input, shape index: {}]
  %s11 = inlined_call_operand.vmem [shape: f32[128,1], index: 11, kind: input, shape index: {}]
  %s12 = inlined_call_operand.vmem [shape: f32[64,128], index: 12, kind: input, shape index: {}]
  %s13 = inlined_call_operand.vmem [shape: f32[64,128], index: 13, kind: input, shape index: {}]
  %s14 = inlined_call_operand.vmem [shape: f32[64,128], index: 14, kind: input, shape index: {}]
  %s15 = inlined_call_operand.vmem [shape: f32[64,1], index: 15, kind: input, shape index: {}]
  %s16 = inlined_call_operand.vmem [shape: f32[64,1], index: 16, kind: input, shape index: {}]
  %s17 = inlined_call_operand.vmem [shape: f32[64,1], index: 17, kind: input, shape index: {}]
  %s18 = inlined_call_operand.hbm [shape: f32[1,1], index: 18, kind: output, shape index: {0}]
  %s19 = inlined_call_operand.hbm [shape: f32[1,1], index: 19, kind: output, shape index: {1}]
  %s20 = inlined_call_operand.hbm [shape: f32[1,1], index: 20, kind: output, shape index: {2}]
  %21 = xla_tuple %s18, %s19, %s20
  %s22 = sld [smem:[#allocation0]]
  $region98: #{vae_forward.1} parent=0
    _
  %s24 = ssub.s32 1, %s22
  %s25 = scalar_select 0, %s24, %s22
  $region1: #{vae_forward.1} parent=0
    #allocation4 [shape = 'u8[512]{0}', space=vmem, size = 0x400, scoped, tag = 'output window, operand 0, single buffered']
    #allocation5 [shape = 's32[1]{0}', space=sflag, size = 0x4, scoped, tag = 'scoped memory for vae_forward.1']
    #allocation6 [shape = 'u8[512]{0}', space=vmem, size = 0x400, scoped, tag = 'output window, operand 1, single buffered']
    #allocation7 [shape = 's32[1]{0}', space=sflag, size = 0x4, scoped, tag = 'scoped memory for vae_forward.1']
    #allocation8 [shape = 'u8[512]{0}', space=vmem, size = 0x400, scoped, tag = 'output window, operand 2, single buffered']
    %26 = vsyncpa [#allocation5], 0
    %27 = vsyncpa [#allocation7], 0
    // Predicated region
    $region2: #{vae_forward.1} parent=1 // pred_check
      _
    $region3: #{vae_forward.1} parent=1 // pred_check_branch
      %29 = sbr.rel (0) target = $region5
    $region4: #{vae_forward.1} parent=1 // pred_region
      _
    $region5: #{vae_forward.1} parent=1 // pred_fallthru
      _
    // Predicated region
    $region6: #{vae_forward.1} parent=1 // pred_check
      _
    $region7: #{vae_forward.1} parent=1 // pred_check_branch
      %31 = sbr.rel (0) target = $region9
    $region8: #{vae_forward.1} parent=1 // pred_region
      _
    $region9: #{vae_forward.1} parent=1 // pred_fallthru
      _
    // Predicated region
    $region10: #{vae_forward.1} parent=1 // pred_check
      _
    $region11: #{vae_forward.1} parent=1 // pred_check_branch
      %33 = sbr.rel (0) target = $region13
    $region12: #{vae_forward.1} parent=1 // pred_region
      _
    $region13: #{vae_forward.1} parent=1 // pred_fallthru
      _
    // Predicated region
    $region14: #{vae_forward.1} parent=1 // pred_check
      _
    $region15: #{vae_forward.1} parent=1 // pred_check_branch
      %35 = sbr.rel (0) target = $region17
    $region16: #{vae_forward.1} parent=1 // pred_region
      _
    $region17: #{vae_forward.1} parent=1 // pred_fallthru
      _
    // Predicated region
    $region18: #{vae_forward.1} parent=1 // pred_check
      _
    $region19: #{vae_forward.1} parent=1 // pred_check_branch
      %37 = sbr.rel (0) target = $region21
    $region20: #{vae_forward.1} parent=1 // pred_region
      _
    $region21: #{vae_forward.1} parent=1 // pred_fallthru
      _
    // Predicated region
    $region22: #{vae_forward.1} parent=1 // pred_check
      _
    $region23: #{vae_forward.1} parent=1 // pred_check_branch
      %39 = sbr.rel (0) target = $region25
    $region24: #{vae_forward.1} parent=1 // pred_region
      _
    $region25: #{vae_forward.1} parent=1 // pred_fallthru
      _
    // Predicated region
    $region26: #{vae_forward.1} parent=1 // pred_check
      _
    $region27: #{vae_forward.1} parent=1 // pred_check_branch
      %41 = sbr.rel (0) target = $region29
    $region28: #{vae_forward.1} parent=1 // pred_region
      _
    $region29: #{vae_forward.1} parent=1 // pred_fallthru
      _
    // Predicated region
    $region30: #{vae_forward.1} parent=1 // pred_check
      _
    $region31: #{vae_forward.1} parent=1 // pred_check_branch
      %43 = sbr.rel (0) target = $region33
    $region32: #{vae_forward.1} parent=1 // pred_region
      _
    $region33: #{vae_forward.1} parent=1 // pred_fallthru
      _
    // Predicated region
    $region34: #{vae_forward.1} parent=1 // pred_check
      _
    $region35: #{vae_forward.1} parent=1 // pred_check_branch
      %45 = sbr.rel (0) target = $region37
    $region36: #{vae_forward.1} parent=1 // pred_region
      _
    $region37: #{vae_forward.1} parent=1 // pred_fallthru
      _
    // Predicated region
    $region38: #{vae_forward.1} parent=1 // pred_check
      _
    $region39: #{vae_forward.1} parent=1 // pred_check_branch
      %47 = sbr.rel (0) target = $region41
    $region40: #{vae_forward.1} parent=1 // pred_region
      _
    $region41: #{vae_forward.1} parent=1 // pred_fallthru
      _
    // Predicated region
    $region42: #{vae_forward.1} parent=1 // pred_check
      _
    $region43: #{vae_forward.1} parent=1 // pred_check_branch
      %49 = sbr.rel (0) target = $region45
    $region44: #{vae_forward.1} parent=1 // pred_region
      _
    $region45: #{vae_forward.1} parent=1 // pred_fallthru
      _
    // Predicated region
    $region46: #{vae_forward.1} parent=1 // pred_check
      _
    $region47: #{vae_forward.1} parent=1 // pred_check_branch
      %51 = sbr.rel (0) target = $region49
    $region48: #{vae_forward.1} parent=1 // pred_region
      _
    $region49: #{vae_forward.1} parent=1 // pred_fallthru
      _
    // Predicated region
    $region50: #{vae_forward.1} parent=1 // pred_check
      _
    $region51: #{vae_forward.1} parent=1 // pred_check_branch
      %53 = sbr.rel (0) target = $region53
    $region52: #{vae_forward.1} parent=1 // pred_region
      _
    $region53: #{vae_forward.1} parent=1 // pred_fallthru
      _
    // Predicated region
    $region54: #{vae_forward.1} parent=1 // pred_check
      _
    $region55: #{vae_forward.1} parent=1 // pred_check_branch
      %55 = sbr.rel (0) target = $region57
    $region56: #{vae_forward.1} parent=1 // pred_region
      _
    $region57: #{vae_forward.1} parent=1 // pred_fallthru
      _
    // Predicated region
    $region58: #{vae_forward.1} parent=1 // pred_check
      _
    $region59: #{vae_forward.1} parent=1 // pred_check_branch
      %57 = sbr.rel (0) target = $region61
    $region60: #{vae_forward.1} parent=1 // pred_region
      _
    $region61: #{vae_forward.1} parent=1 // pred_fallthru
      _
    // Predicated region
    $region62: #{vae_forward.1} parent=1 // pred_check
      _
    $region63: #{vae_forward.1} parent=1 // pred_check_branch
      %59 = sbr.rel (0) target = $region65
    $region64: #{vae_forward.1} parent=1 // pred_region
      _
    $region65: #{vae_forward.1} parent=1 // pred_fallthru
      _
    // Predicated region
    $region66: #{vae_forward.1} parent=1 // pred_check
      _
    $region67: #{vae_forward.1} parent=1 // pred_check_branch
      %61 = sbr.rel (0) target = $region69
    $region68: #{vae_forward.1} parent=1 // pred_region
      _
    $region69: #{vae_forward.1} parent=1 // pred_fallthru
      _
    // Predicated region
    $region70: #{vae_forward.1} parent=1 // pred_check
      _
    $region71: #{vae_forward.1} parent=1 // pred_check_branch
      %63 = sbr.rel (0) target = $region73
    $region72: #{vae_forward.1} parent=1 // pred_region
      _
    $region73: #{vae_forward.1} parent=1 // pred_fallthru
      _
    %v64 = vld [vmem:[%s2] sm:$0xff]
    %v65 = vld [vmem:[%s2 + $0x8] sm:$0xff]
    %v66 = vld [vmem:[%s2 + $0x10] sm:$0xff]
    %v67 = vld [vmem:[%s2 + $0x18] sm:$0xff]
    %v68 = vld [vmem:[%s2 + $0x20] sm:$0xff]
    %v69 = vld [vmem:[%s2 + $0x28] sm:$0xff]
    %v70 = vld [vmem:[%s2 + $0x30] sm:$0xff]
    %v71 = vld [vmem:[%s2 + $0x38] sm:$0xff]
    %v72 = vld [vmem:[%s3] sm:$0xff]
    %v73 = vld [vmem:[%s3 + $0x8] sm:$0xff]
    %v74 = vld [vmem:[%s3 + $0x10] sm:$0xff]
    %v75 = vld [vmem:[%s3 + $0x18] sm:$0xff]
    %v76 = vld [vmem:[%s3 + $0x20] sm:$0xff]
    %v77 = vld [vmem:[%s3 + $0x28] sm:$0xff]
    %v78 = vld [vmem:[%s3 + $0x30] sm:$0xff]
    %v79 = vld [vmem:[%s3 + $0x38] sm:$0xff]
    %v80 = vld [vmem:[%s4] sm:$0xff]
    %v81 = vld [vmem:[%s4 + $0x8] sm:$0xff]
    %v82 = vld [vmem:[%s4 + $0x10] sm:$0xff]
    %v83 = vld [vmem:[%s4 + $0x18] sm:$0xff]
    %v84 = vld [vmem:[%s4 + $0x20] sm:$0xff]
    %v85 = vld [vmem:[%s4 + $0x28] sm:$0xff]
    %v86 = vld [vmem:[%s4 + $0x30] sm:$0xff]
    %v87 = vld [vmem:[%s4 + $0x38] sm:$0xff]
    %v88 = vld [vmem:[%s4 + $0x40] sm:$0xff]
    %v89 = vld [vmem:[%s4 + $0x48] sm:$0xff]
    %v90 = vld [vmem:[%s4 + $0x50] sm:$0xff]
    %v91 = vld [vmem:[%s4 + $0x58] sm:$0xff]
    %v92 = vld [vmem:[%s4 + $0x60] sm:$0xff]
    %v93 = vld [vmem:[%s4 + $0x68] sm:$0xff]
    %v94 = vld [vmem:[%s4 + $0x70] sm:$0xff]
    %v95 = vld [vmem:[%s4 + $0x78] sm:$0xff]
    %v96 = vld [vmem:[%s5] sm:$0xff]
    %v97 = vld [vmem:[%s5 + $0x8] sm:$0xff]
    %v98 = vld [vmem:[%s5 + $0x10] sm:$0xff]
    %v99 = vld [vmem:[%s5 + $0x18] sm:$0xff]
    %v100 = vld [vmem:[%s5 + $0x20] sm:$0xff]
    %v101 = vld [vmem:[%s5 + $0x28] sm:$0xff]
    %v102 = vld [vmem:[%s5 + $0x30] sm:$0xff]
    %v103 = vld [vmem:[%s5 + $0x38] sm:$0xff]
    %v104 = vld [vmem:[%s5 + $0x40] sm:$0xff]
    %v105 = vld [vmem:[%s5 + $0x48] sm:$0xff]
    %v106 = vld [vmem:[%s5 + $0x50] sm:$0xff]
    %v107 = vld [vmem:[%s5 + $0x58] sm:$0xff]
    %v108 = vld [vmem:[%s5 + $0x60] sm:$0xff]
    %v109 = vld [vmem:[%s5 + $0x68] sm:$0xff]
    %v110 = vld [vmem:[%s5 + $0x70] sm:$0xff]
    %v111 = vld [vmem:[%s5 + $0x78] sm:$0xff]
    %v112 = vld [vmem:[%s0] sm:$0x7]
    %114 = vset.pattern.permute.xlu0 0
    %115 = vperm.xlu0 %114, %v72
    %v116 = vpop.permute.xlu0 %115
    %119 = vset.pattern.permute.xlu0 0
    %120 = vperm.xlu0 %119, %v73
    %v121 = vpop.permute.xlu0 %120
    %124 = vset.pattern.permute.xlu0 0
    %125 = vperm.xlu0 %124, %v74
    %v126 = vpop.permute.xlu0 %125
    %129 = vset.pattern.permute.xlu0 0
    %130 = vperm.xlu0 %129, %v75
    %v131 = vpop.permute.xlu0 %130
    %134 = vset.pattern.permute.xlu0 0
    %135 = vperm.xlu0 %134, %v76
    %v136 = vpop.permute.xlu0 %135
    %139 = vset.pattern.permute.xlu0 0
    %140 = vperm.xlu0 %139, %v77
    %v141 = vpop.permute.xlu0 %140
    %144 = vset.pattern.permute.xlu0 0
    %145 = vperm.xlu0 %144, %v78
    %v146 = vpop.permute.xlu0 %145
    %149 = vset.pattern.permute.xlu0 0
    %150 = vperm.xlu0 %149, %v79
    %v151 = vpop.permute.xlu0 %150
    %vm153 = vcmask 23552
    %v155 = vsel %vm153, %v64, 0
    %v158 = vsel %vm153, %v65, 0
    %v161 = vsel %vm153, %v66, 0
    %v164 = vsel %vm153, %v67, 0
    %v167 = vsel %vm153, %v68, 0
    %v170 = vsel %vm153, %v69, 0
    %v173 = vsel %vm153, %v70, 0
    %v176 = vsel %vm153, %v71, 0
    %vm178 = vcmask 1042432
    %v180 = vsel %vm178, %v112, 0
    %182 = vmatpush.msra.mxu0 0.0
    %183 = vmatpush.msra.mxu0 0.0
    %184 = vmatpush.msra.mxu0 0.0
    %185 = vmatpush.msra.mxu0 0.0
    %186 = vmatpush.msra.mxu0 0.0
    %187 = vmatpush.msra.mxu0 0.0
    %188 = vmatpush.msra.mxu0 0.0
    %189 = vmatpush.msra.mxu0 0.0
    %190 = vmatpush.msra.mxu0 0.0
    %191 = vmatpush.msra.mxu0 0.0
    %192 = vmatpush.msra.mxu0 0.0
    %193 = vmatpush.msra.mxu0 0.0
    %194 = vmatpush.msra.mxu0 0.0
    %195 = vmatpush.msra.mxu0 0.0
    %196 = vmatpush.msra.mxu0 0.0
    %197 = vmatpush.msra.mxu0 %v180
    %198 = vmatmul.f32.gmra.mxu0 %v155
    %v199 = vpop.f32.mrf.mxu0
    %v200 = vadd.f32 %v116, %v199
    %201 = vmatmul.f32.gmra.mxu0 %v158
    %v202 = vpop.f32.mrf.mxu0
    %v203 = vadd.f32 %v121, %v202
    %204 = vmatmul.f32.gmra.mxu0 %v161
    %v205 = vpop.f32.mrf.mxu0
    %v206 = vadd.f32 %v126, %v205
    %207 = vmatmul.f32.gmra.mxu0 %v164
    %v208 = vpop.f32.mrf.mxu0
    %v209 = vadd.f32 %v131, %v208
    %210 = vmatmul.f32.gmra.mxu0 %v167
    %v211 = vpop.f32.mrf.mxu0
    %v212 = vadd.f32 %v136, %v211
    %213 = vmatmul.f32.gmra.mxu0 %v170
    %v214 = vpop.f32.mrf.mxu0
    %v215 = vadd.f32 %v141, %v214
    %216 = vmatmul.f32.gmra.mxu0 %v173
    %v217 = vpop.f32.mrf.mxu0
    %v218 = vadd.f32 %v146, %v217
    %219 = vmatmul.f32.gmra.mxu0 %v176
    %v220 = vpop.f32.mrf.mxu0
    %v221 = vadd.f32 %v151, %v220
    %222 = vdwg.mxu0
    %v223 = vmax.f32 %v200, 0.0
    %v224 = vmax.f32 %v203, 0.0
    %v225 = vmax.f32 %v206, 0.0
    %v226 = vmax.f32 %v209, 0.0
    %v227 = vmax.f32 %v212, 0.0
    %v228 = vmax.f32 %v215, 0.0
    %v229 = vmax.f32 %v218, 0.0
    %v230 = vmax.f32 %v221, 0.0
    %232 = vset.pattern.permute.xlu0 0
    %233 = vperm.xlu0 %232, %v96
    %v234 = vpop.permute.xlu0 %233
    %237 = vset.pattern.permute.xlu0 0
    %238 = vperm.xlu0 %237, %v97
    %v239 = vpop.permute.xlu0 %238
    %242 = vset.pattern.permute.xlu0 0
    %243 = vperm.xlu0 %242, %v98
    %v244 = vpop.permute.xlu0 %243
    %247 = vset.pattern.permute.xlu0 0
    %248 = vperm.xlu0 %247, %v99
    %v249 = vpop.permute.xlu0 %248
    %252 = vset.pattern.permute.xlu0 0
    %253 = vperm.xlu0 %252, %v100
    %v254 = vpop.permute.xlu0 %253
    %257 = vset.pattern.permute.xlu0 0
    %258 = vperm.xlu0 %257, %v101
    %v259 = vpop.permute.xlu0 %258
    %262 = vset.pattern.permute.xlu0 0
    %263 = vperm.xlu0 %262, %v102
    %v264 = vpop.permute.xlu0 %263
    %267 = vset.pattern.permute.xlu0 0
    %268 = vperm.xlu0 %267, %v103
    %v269 = vpop.permute.xlu0 %268
    %272 = vset.pattern.permute.xlu0 0
    %273 = vperm.xlu0 %272, %v104
    %v274 = vpop.permute.xlu0 %273
    %277 = vset.pattern.permute.xlu0 0
    %278 = vperm.xlu0 %277, %v105
    %v279 = vpop.permute.xlu0 %278
    %282 = vset.pattern.permute.xlu0 0
    %283 = vperm.xlu0 %282, %v106
    %v284 = vpop.permute.xlu0 %283
    %287 = vset.pattern.permute.xlu0 0
    %288 = vperm.xlu0 %287, %v107
    %v289 = vpop.permute.xlu0 %288
    %292 = vset.pattern.permute.xlu0 0
    %293 = vperm.xlu0 %292, %v108
    %v294 = vpop.permute.xlu0 %293
    %297 = vset.pattern.permute.xlu0 0
    %298 = vperm.xlu0 %297, %v109
    %v299 = vpop.permute.xlu0 %298
    %302 = vset.pattern.permute.xlu0 0
    %303 = vperm.xlu0 %302, %v110
    %v304 = vpop.permute.xlu0 %303
    %307 = vset.pattern.permute.xlu0 0
    %308 = vperm.xlu0 %307, %v111
    %v309 = vpop.permute.xlu0 %308
    %vm311 = vcmask 523264
    %v313 = vsel %vm311, %v80, 0
    %v316 = vsel %vm311, %v81, 0
    %v319 = vsel %vm311, %v82, 0
    %v322 = vsel %vm311, %v83, 0
    %v325 = vsel %vm311, %v84, 0
    %v328 = vsel %vm311, %v85, 0
    %v331 = vsel %vm311, %v86, 0
    %v334 = vsel %vm311, %v87, 0
    %v337 = vsel %vm311, %v88, 0
    %v340 = vsel %vm311, %v89, 0
    %v343 = vsel %vm311, %v90, 0
    %v346 = vsel %vm311, %v91, 0
    %v349 = vsel %vm311, %v92, 0
    %v352 = vsel %vm311, %v93, 0
    %v355 = vsel %vm311, %v94, 0
    %v358 = vsel %vm311, %v95, 0
    %360 = vmatpush.msra.mxu0 0.0
    %361 = vmatpush.msra.mxu0 0.0
    %362 = vmatpush.msra.mxu0 0.0
    %363 = vmatpush.msra.mxu0 0.0
    %364 = vmatpush.msra.mxu0 0.0
    %365 = vmatpush.msra.mxu0 0.0
    %366 = vmatpush.msra.mxu0 0.0
    %367 = vmatpush.msra.mxu0 0.0
    %368 = vmatpush.msra.mxu0 %v230
    %369 = vmatpush.msra.mxu0 %v229
    %370 = vmatpush.msra.mxu0 %v228
    %371 = vmatpush.msra.mxu0 %v227
    %372 = vmatpush.msra.mxu0 %v226
    %373 = vmatpush.msra.mxu0 %v225
    %374 = vmatpush.msra.mxu0 %v224
    %375 = vmatpush.msra.mxu0 %v223
    %376 = vmatmul.f32.gmra.mxu0 %v313
    %v377 = vpop.f32.mrf.mxu0
    %v378 = vadd.f32 %v234, %v377
    %379 = vmatmul.f32.gmra.mxu0 %v316
    %v380 = vpop.f32.mrf.mxu0
    %v381 = vadd.f32 %v239, %v380
    %382 = vmatmul.f32.gmra.mxu0 %v319
    %v383 = vpop.f32.mrf.mxu0
    %v384 = vadd.f32 %v244, %v383
    %385 = vmatmul.f32.gmra.mxu0 %v322
    %v386 = vpop.f32.mrf.mxu0
    %v387 = vadd.f32 %v249, %v386
    %388 = vmatmul.f32.gmra.mxu0 %v325
    %v389 = vpop.f32.mrf.mxu0
    %v390 = vadd.f32 %v254, %v389
    %391 = vmatmul.f32.gmra.mxu0 %v328
    %v392 = vpop.f32.mrf.mxu0
    %v393 = vadd.f32 %v259, %v392
    %394 = vmatmul.f32.gmra.mxu0 %v331
    %v395 = vpop.f32.mrf.mxu0
    %v396 = vadd.f32 %v264, %v395
    %397 = vmatmul.f32.gmra.mxu0 %v334
    %v398 = vpop.f32.mrf.mxu0
    %v399 = vadd.f32 %v269, %v398
    %400 = vmatmul.f32.gmra.mxu0 %v337
    %v401 = vpop.f32.mrf.mxu0
    %v402 = vadd.f32 %v274, %v401
    %403 = vmatmul.f32.gmra.mxu0 %v340
    %v404 = vpop.f32.mrf.mxu0
    %v405 = vadd.f32 %v279, %v404
    %406 = vmatmul.f32.gmra.mxu0 %v343
    %v407 = vpop.f32.mrf.mxu0
    %v408 = vadd.f32 %v284, %v407
    %409 = vmatmul.f32.gmra.mxu0 %v346
    %v410 = vpop.f32.mrf.mxu0
    %v411 = vadd.f32 %v289, %v410
    %412 = vmatmul.f32.gmra.mxu0 %v349
    %v413 = vpop.f32.mrf.mxu0
    %v414 = vadd.f32 %v294, %v413
    %415 = vmatmul.f32.gmra.mxu0 %v352
    %v416 = vpop.f32.mrf.mxu0
    %v417 = vadd.f32 %v299, %v416
    %418 = vmatmul.f32.gmra.mxu0 %v355
    %v419 = vpop.f32.mrf.mxu0
    %v420 = vadd.f32 %v304, %v419
    %421 = vmatmul.f32.gmra.mxu0 %v358
    %v422 = vpop.f32.mrf.mxu0
    %v423 = vadd.f32 %v309, %v422
    %424 = vdwg.mxu0
    %v425 = vmax.f32 %v378, 0.0
    %v426 = vmax.f32 %v381, 0.0
    %v427 = vmax.f32 %v384, 0.0
    %v428 = vmax.f32 %v387, 0.0
    %v429 = vmax.f32 %v390, 0.0
    %v430 = vmax.f32 %v393, 0.0
    %v431 = vmax.f32 %v396, 0.0
    %v432 = vmax.f32 %v399, 0.0
    %v433 = vmax.f32 %v402, 0.0
    %v434 = vmax.f32 %v405, 0.0
    %v435 = vmax.f32 %v408, 0.0
    %v436 = vmax.f32 %v411, 0.0
    %v437 = vmax.f32 %v414, 0.0
    %v438 = vmax.f32 %v417, 0.0
    %v439 = vmax.f32 %v420, 0.0
    %v440 = vmax.f32 %v423, 0.0
    %v441 = vsel %vm311, %v425, -inf
    %442 = vmax.xlane.f32.xlu0 %v441
    %v443 = vpop.xlane.xlu0 %442
    %v444 = vsel %vm311, %v426, -inf
    %445 = vmax.xlane.f32.xlu0 %v444
    %v446 = vpop.xlane.xlu0 %445
    %v447 = vsel %vm311, %v427, -inf
    %448 = vmax.xlane.f32.xlu0 %v447
    %v449 = vpop.xlane.xlu0 %448
    %v450 = vsel %vm311, %v428, -inf
    %451 = vmax.xlane.f32.xlu0 %v450
    %v452 = vpop.xlane.xlu0 %451
    %v453 = vsel %vm311, %v429, -inf
    %454 = vmax.xlane.f32.xlu0 %v453
    %v455 = vpop.xlane.xlu0 %454
    %v456 = vsel %vm311, %v430, -inf
    %457 = vmax.xlane.f32.xlu0 %v456
    %v458 = vpop.xlane.xlu0 %457
    %v459 = vsel %vm311, %v431, -inf
    %460 = vmax.xlane.f32.xlu0 %v459
    %v461 = vpop.xlane.xlu0 %460
    %v462 = vsel %vm311, %v432, -inf
    %463 = vmax.xlane.f32.xlu0 %v462
    %v464 = vpop.xlane.xlu0 %463
    %v465 = vsel %vm311, %v433, -inf
    %466 = vmax.xlane.f32.xlu0 %v465
    %v467 = vpop.xlane.xlu0 %466
    %v468 = vsel %vm311, %v434, -inf
    %469 = vmax.xlane.f32.xlu0 %v468
    %v470 = vpop.xlane.xlu0 %469
    %v471 = vsel %vm311, %v435, -inf
    %472 = vmax.xlane.f32.xlu0 %v471
    %v473 = vpop.xlane.xlu0 %472
    %v474 = vsel %vm311, %v436, -inf
    %475 = vmax.xlane.f32.xlu0 %v474
    %v476 = vpop.xlane.xlu0 %475
    %v477 = vsel %vm311, %v437, -inf
    %478 = vmax.xlane.f32.xlu0 %v477
    %v479 = vpop.xlane.xlu0 %478
    %v480 = vsel %vm311, %v438, -inf
    %481 = vmax.xlane.f32.xlu0 %v480
    %v482 = vpop.xlane.xlu0 %481
    %v483 = vsel %vm311, %v439, -inf
    %484 = vmax.xlane.f32.xlu0 %v483
    %v485 = vpop.xlane.xlu0 %484
    %v486 = vsel %vm311, %v440, -inf
    %487 = vmax.xlane.f32.xlu0 %v486
    %v488 = vpop.xlane.xlu0 %487
    %vm489 = vcmask 7168
    %490 = vst.msk [vmem:[#allocation2] sm:$0xff] %vm489, %v443
    %491 = vst.msk [vmem:[#allocation2 + $0x8] sm:$0xff] %vm489, %v446
    %492 = vst.msk [vmem:[#allocation2 + $0x10] sm:$0xff] %vm489, %v449
    %493 = vst.msk [vmem:[#allocation2 + $0x18] sm:$0xff] %vm489, %v452
    %494 = vst.msk [vmem:[#allocation2 + $0x20] sm:$0xff] %vm489, %v455
    %495 = vst.msk [vmem:[#allocation2 + $0x28] sm:$0xff] %vm489, %v458
    %496 = vst.msk [vmem:[#allocation2 + $0x30] sm:$0xff] %vm489, %v461
    %497 = vst.msk [vmem:[#allocation2 + $0x38] sm:$0xff] %vm489, %v464
    %498 = vst.msk [vmem:[#allocation2 + $0x40] sm:$0xff] %vm489, %v467
    %499 = vst.msk [vmem:[#allocation2 + $0x48] sm:$0xff] %vm489, %v470
    %500 = vst.msk [vmem:[#allocation2 + $0x50] sm:$0xff] %vm489, %v473
    %501 = vst.msk [vmem:[#allocation2 + $0x58] sm:$0xff] %vm489, %v476
    %502 = vst.msk [vmem:[#allocation2 + $0x60] sm:$0xff] %vm489, %v479
    %503 = vst.msk [vmem:[#allocation2 + $0x68] sm:$0xff] %vm489, %v482
    %504 = vst.msk [vmem:[#allocation2 + $0x70] sm:$0xff] %vm489, %v485
    %505 = vst.msk [vmem:[#allocation2 + $0x78] sm:$0xff] %vm489, %v488
    %s506 = scalar_lea.vmem %s0, 4
    %v507 = vld [vmem:[%s506] sm:$0x7]
    %v509 = vsel %vm178, %v507, 0
    %511 = vmatpush.msra.mxu0 0.0
    %512 = vmatpush.msra.mxu0 0.0
    %513 = vmatpush.msra.mxu0 0.0
    %514 = vmatpush.msra.mxu0 0.0
    %515 = vmatpush.msra.mxu0 0.0
    %516 = vmatpush.msra.mxu0 0.0
    %517 = vmatpush.msra.mxu0 0.0
    %518 = vmatpush.msra.mxu0 0.0
    %519 = vmatpush.msra.mxu0 0.0
    %520 = vmatpush.msra.mxu0 0.0
    %521 = vmatpush.msra.mxu0 0.0
    %522 = vmatpush.msra.mxu0 0.0
    %523 = vmatpush.msra.mxu0 0.0
    %524 = vmatpush.msra.mxu0 0.0
    %525 = vmatpush.msra.mxu0 0.0
    %526 = vmatpush.msra.mxu0 %v509
    %527 = vmatmul.f32.gmra.mxu0 %v155
    %v528 = vpop.f32.mrf.mxu0
    %v529 = vadd.f32 %v116, %v528
    %530 = vmatmul.f32.gmra.mxu0 %v158
    %v531 = vpop.f32.mrf.mxu0
    %v532 = vadd.f32 %v121, %v531
    %533 = vmatmul.f32.gmra.mxu0 %v161
    %v534 = vpop.f32.mrf.mxu0
    %v535 = vadd.f32 %v126, %v534
    %536 = vmatmul.f32.gmra.mxu0 %v164
    %v537 = vpop.f32.mrf.mxu0
    %v538 = vadd.f32 %v131, %v537
    %539 = vmatmul.f32.gmra.mxu0 %v167
    %v540 = vpop.f32.mrf.mxu0
    %v541 = vadd.f32 %v136, %v540
    %542 = vmatmul.f32.gmra.mxu0 %v170
    %v543 = vpop.f32.mrf.mxu0
    %v544 = vadd.f32 %v141, %v543
    %545 = vmatmul.f32.gmra.mxu0 %v173
    %v546 = vpop.f32.mrf.mxu0
    %v547 = vadd.f32 %v146, %v546
    %548 = vmatmul.f32.gmra.mxu0 %v176
    %v549 = vpop.f32.mrf.mxu0
    %v550 = vadd.f32 %v151, %v549
    %551 = vdwg.mxu0
    %v552 = vmax.f32 %v529, 0.0
    %v553 = vmax.f32 %v532, 0.0
    %v554 = vmax.f32 %v535, 0.0
    %v555 = vmax.f32 %v538, 0.0
    %v556 = vmax.f32 %v541, 0.0
    %v557 = vmax.f32 %v544, 0.0
    %v558 = vmax.f32 %v547, 0.0
    %v559 = vmax.f32 %v550, 0.0
    %560 = vmatpush.msra.mxu0 0.0
    %561 = vmatpush.msra.mxu0 0.0
    %562 = vmatpush.msra.mxu0 0.0
    %563 = vmatpush.msra.mxu0 0.0
    %564 = vmatpush.msra.mxu0 0.0
    %565 = vmatpush.msra.mxu0 0.0
    %566 = vmatpush.msra.mxu0 0.0
    %567 = vmatpush.msra.mxu0 0.0
    %568 = vmatpush.msra.mxu0 %v559
    %569 = vmatpush.msra.mxu0 %v558
    %570 = vmatpush.msra.mxu0 %v557
    %571 = vmatpush.msra.mxu0 %v556
    %572 = vmatpush.msra.mxu0 %v555
    %573 = vmatpush.msra.mxu0 %v554
    %574 = vmatpush.msra.mxu0 %v553
    %575 = vmatpush.msra.mxu0 %v552
    %576 = vmatmul.f32.gmra.mxu0 %v313
    %v577 = vpop.f32.mrf.mxu0
    %v578 = vadd.f32 %v234, %v577
    %579 = vmatmul.f32.gmra.mxu0 %v316
    %v580 = vpop.f32.mrf.mxu0
    %v581 = vadd.f32 %v239, %v580
    %582 = vmatmul.f32.gmra.mxu0 %v319
    %v583 = vpop.f32.mrf.mxu0
    %v584 = vadd.f32 %v244, %v583
    %585 = vmatmul.f32.gmra.mxu0 %v322
    %v586 = vpop.f32.mrf.mxu0
    %v587 = vadd.f32 %v249, %v586
    %588 = vmatmul.f32.gmra.mxu0 %v325
    %v589 = vpop.f32.mrf.mxu0
    %v590 = vadd.f32 %v254, %v589
    %591 = vmatmul.f32.gmra.mxu0 %v328
    %v592 = vpop.f32.mrf.mxu0
    %v593 = vadd.f32 %v259, %v592
    %594 = vmatmul.f32.gmra.mxu0 %v331
    %v595 = vpop.f32.mrf.mxu0
    %v596 = vadd.f32 %v264, %v595
    %597 = vmatmul.f32.gmra.mxu0 %v334
    %v598 = vpop.f32.mrf.mxu0
    %v599 = vadd.f32 %v269, %v598
    %600 = vmatmul.f32.gmra.mxu0 %v337
    %v601 = vpop.f32.mrf.mxu0
    %v602 = vadd.f32 %v274, %v601
    %603 = vmatmul.f32.gmra.mxu0 %v340
    %v604 = vpop.f32.mrf.mxu0
    %v605 = vadd.f32 %v279, %v604
    %606 = vmatmul.f32.gmra.mxu0 %v343
    %v607 = vpop.f32.mrf.mxu0
    %v608 = vadd.f32 %v284, %v607
    %609 = vmatmul.f32.gmra.mxu0 %v346
    %v610 = vpop.f32.mrf.mxu0
    %v611 = vadd.f32 %v289, %v610
    %612 = vmatmul.f32.gmra.mxu0 %v349
    %v613 = vpop.f32.mrf.mxu0
    %v614 = vadd.f32 %v294, %v613
    %615 = vmatmul.f32.gmra.mxu0 %v352
    %v616 = vpop.f32.mrf.mxu0
    %v617 = vadd.f32 %v299, %v616
    %618 = vmatmul.f32.gmra.mxu0 %v355
    %v619 = vpop.f32.mrf.mxu0
    %v620 = vadd.f32 %v304, %v619
    %621 = vmatmul.f32.gmra.mxu0 %v358
    %v622 = vpop.f32.mrf.mxu0
    %v623 = vadd.f32 %v309, %v622
    %624 = vdwg.mxu0
    %v625 = vmax.f32 %v578, 0.0
    %v626 = vmax.f32 %v581, 0.0
    %v627 = vmax.f32 %v584, 0.0
    %v628 = vmax.f32 %v587, 0.0
    %v629 = vmax.f32 %v590, 0.0
    %v630 = vmax.f32 %v593, 0.0
    %v631 = vmax.f32 %v596, 0.0
    %v632 = vmax.f32 %v599, 0.0
    %v633 = vmax.f32 %v602, 0.0
    %v634 = vmax.f32 %v605, 0.0
    %v635 = vmax.f32 %v608, 0.0
    %v636 = vmax.f32 %v611, 0.0
    %v637 = vmax.f32 %v614, 0.0
    %v638 = vmax.f32 %v617, 0.0
    %v639 = vmax.f32 %v620, 0.0
    %v640 = vmax.f32 %v623, 0.0
    %v641 = vsel %vm311, %v625, -inf
    %642 = vmax.xlane.f32.xlu0 %v641
    %v643 = vpop.xlane.xlu0 %642
    %v644 = vsel %vm311, %v626, -inf
    %645 = vmax.xlane.f32.xlu0 %v644
    %v646 = vpop.xlane.xlu0 %645
    %v647 = vsel %vm311, %v627, -inf
    %648 = vmax.xlane.f32.xlu0 %v647
    %v649 = vpop.xlane.xlu0 %648
    %v650 = vsel %vm311, %v628, -inf
    %651 = vmax.xlane.f32.xlu0 %v650
    %v652 = vpop.xlane.xlu0 %651
    %v653 = vsel %vm311, %v629, -inf
    %654 = vmax.xlane.f32.xlu0 %v653
    %v655 = vpop.xlane.xlu0 %654
    %v656 = vsel %vm311, %v630, -inf
    %657 = vmax.xlane.f32.xlu0 %v656
    %v658 = vpop.xlane.xlu0 %657
    %v659 = vsel %vm311, %v631, -inf
    %660 = vmax.xlane.f32.xlu0 %v659
    %v661 = vpop.xlane.xlu0 %660
    %v662 = vsel %vm311, %v632, -inf
    %663 = vmax.xlane.f32.xlu0 %v662
    %v664 = vpop.xlane.xlu0 %663
    %v665 = vsel %vm311, %v633, -inf
    %666 = vmax.xlane.f32.xlu0 %v665
    %v667 = vpop.xlane.xlu0 %666
    %v668 = vsel %vm311, %v634, -inf
    %669 = vmax.xlane.f32.xlu0 %v668
    %v670 = vpop.xlane.xlu0 %669
    %v671 = vsel %vm311, %v635, -inf
    %672 = vmax.xlane.f32.xlu0 %v671
    %v673 = vpop.xlane.xlu0 %672
    %v674 = vsel %vm311, %v636, -inf
    %675 = vmax.xlane.f32.xlu0 %v674
    %v676 = vpop.xlane.xlu0 %675
    %v677 = vsel %vm311, %v637, -inf
    %678 = vmax.xlane.f32.xlu0 %v677
    %v679 = vpop.xlane.xlu0 %678
    %v680 = vsel %vm311, %v638, -inf
    %681 = vmax.xlane.f32.xlu0 %v680
    %v682 = vpop.xlane.xlu0 %681
    %v683 = vsel %vm311, %v639, -inf
    %684 = vmax.xlane.f32.xlu0 %v683
    %v685 = vpop.xlane.xlu0 %684
    %v686 = vsel %vm311, %v640, -inf
    %687 = vmax.xlane.f32.xlu0 %v686
    %v688 = vpop.xlane.xlu0 %687
    %vm689 = vcmask 15368
    %690 = vst.msk [vmem:[#allocation2] sm:$0xff] %vm689, %v643
    %691 = vst.msk [vmem:[#allocation2 + $0x8] sm:$0xff] %vm689, %v646
    %692 = vst.msk [vmem:[#allocation2 + $0x10] sm:$0xff] %vm689, %v649
    %693 = vst.msk [vmem:[#allocation2 + $0x18] sm:$0xff] %vm689, %v652
    %694 = vst.msk [vmem:[#allocation2 + $0x20] sm:$0xff] %vm689, %v655
    %695 = vst.msk [vmem:[#allocation2 + $0x28] sm:$0xff] %vm689, %v658
    %696 = vst.msk [vmem:[#allocation2 + $0x30] sm:$0xff] %vm689, %v661
    %697 = vst.msk [vmem:[#allocation2 + $0x38] sm:$0xff] %vm689, %v664
    %698 = vst.msk [vmem:[#allocation2 + $0x40] sm:$0xff] %vm689, %v667
    %699 = vst.msk [vmem:[#allocation2 + $0x48] sm:$0xff] %vm689, %v670
    %700 = vst.msk [vmem:[#allocation2 + $0x50] sm:$0xff] %vm689, %v673
    %701 = vst.msk [vmem:[#allocation2 + $0x58] sm:$0xff] %vm689, %v676
    %702 = vst.msk [vmem:[#allocation2 + $0x60] sm:$0xff] %vm689, %v679
    %703 = vst.msk [vmem:[#allocation2 + $0x68] sm:$0xff] %vm689, %v682
    %704 = vst.msk [vmem:[#allocation2 + $0x70] sm:$0xff] %vm689, %v685
    %705 = vst.msk [vmem:[#allocation2 + $0x78] sm:$0xff] %vm689, %v688
    %v706 = vld [vmem:[#allocation2] sm:$0xff]
    %v707 = vld [vmem:[#allocation2 + $0x8] sm:$0xff]
    %v708 = vld [vmem:[#allocation2 + $0x10] sm:$0xff]
    %v709 = vld [vmem:[#allocation2 + $0x18] sm:$0xff]
    %v710 = vld [vmem:[#allocation2 + $0x20] sm:$0xff]
    %v711 = vld [vmem:[#allocation2 + $0x28] sm:$0xff]
    %v712 = vld [vmem:[#allocation2 + $0x30] sm:$0xff]
    %v713 = vld [vmem:[#allocation2 + $0x38] sm:$0xff]
    %v714 = vld [vmem:[#allocation2 + $0x40] sm:$0xff]
    %v715 = vld [vmem:[#allocation2 + $0x48] sm:$0xff]
    %v716 = vld [vmem:[#allocation2 + $0x50] sm:$0xff]
    %v717 = vld [vmem:[#allocation2 + $0x58] sm:$0xff]
    %v718 = vld [vmem:[#allocation2 + $0x60] sm:$0xff]
    %v719 = vld [vmem:[#allocation2 + $0x68] sm:$0xff]
    %v720 = vld [vmem:[#allocation2 + $0x70] sm:$0xff]
    %v721 = vld [vmem:[#allocation2 + $0x78] sm:$0xff]
    %v722 = vld [vmem:[%s6] sm:$0xff]
    %v723 = vld [vmem:[%s6 + $0x8] sm:$0xff]
    %v724 = vld [vmem:[%s6 + $0x10] sm:$0xff]
    %v725 = vld [vmem:[%s6 + $0x18] sm:$0xff]
    %v726 = vld [vmem:[%s7] sm:$0xff]
    %v727 = vld [vmem:[%s7 + $0x8] sm:$0xff]
    %v728 = vld [vmem:[%s7 + $0x10] sm:$0xff]
    %v729 = vld [vmem:[%s7 + $0x18] sm:$0xff]
    %731 = vset.pattern.permute.xlu0 0
    %732 = vperm.xlu0 %731, %v726
    %v733 = vpop.permute.xlu0 %732
    %736 = vset.pattern.permute.xlu0 0
    %737 = vperm.xlu0 %736, %v727
    %v738 = vpop.permute.xlu0 %737
    %741 = vset.pattern.permute.xlu0 0
    %742 = vperm.xlu0 %741, %v728
    %v743 = vpop.permute.xlu0 %742
    %746 = vset.pattern.permute.xlu0 0
    %747 = vperm.xlu0 %746, %v729
    %v748 = vpop.permute.xlu0 %747
    %750 = vmatpush.msra.mxu0 %v721
    %751 = vmatpush.msra.mxu0 %v720
    %752 = vmatpush.msra.mxu0 %v719
    %753 = vmatpush.msra.mxu0 %v718
    %754 = vmatpush.msra.mxu0 %v717
    %755 = vmatpush.msra.mxu0 %v716
    %756 = vmatpush.msra.mxu0 %v715
    %757 = vmatpush.msra.mxu0 %v714
    %758 = vmatpush.msra.mxu0 %v713
    %759 = vmatpush.msra.mxu0 %v712
    %760 = vmatpush.msra.mxu0 %v711
    %761 = vmatpush.msra.mxu0 %v710
    %762 = vmatpush.msra.mxu0 %v709
    %763 = vmatpush.msra.mxu0 %v708
    %764 = vmatpush.msra.mxu0 %v707
    %765 = vmatpush.msra.mxu0 %v706
    %766 = vmatmul.f32.gmra.mxu0 %v722
    %v767 = vpop.f32.mrf.mxu0
    %v768 = vadd.f32 %v733, %v767
    %769 = vmatmul.f32.gmra.mxu0 %v723
    %v770 = vpop.f32.mrf.mxu0
    %v771 = vadd.f32 %v738, %v770
    %772 = vmatmul.f32.gmra.mxu0 %v724
    %v773 = vpop.f32.mrf.mxu0
    %v774 = vadd.f32 %v743, %v773
    %775 = vmatmul.f32.gmra.mxu0 %v725
    %v776 = vpop.f32.mrf.mxu0
    %v777 = vadd.f32 %v748, %v776
    %778 = vdwg.mxu0
    %v779 = vld [vmem:[%s8] sm:$0xff]
    %v780 = vld [vmem:[%s8 + $0x8] sm:$0xff]
    %v781 = vld [vmem:[%s8 + $0x10] sm:$0xff]
    %v782 = vld [vmem:[%s8 + $0x18] sm:$0xff]
    %v783 = vld [vmem:[%s9] sm:$0xff]
    %v784 = vld [vmem:[%s9 + $0x8] sm:$0xff]
    %v785 = vld [vmem:[%s9 + $0x10] sm:$0xff]
    %v786 = vld [vmem:[%s9 + $0x18] sm:$0xff]
    %788 = vset.pattern.permute.xlu0 0
    %789 = vperm.xlu0 %788, %v783
    %v790 = vpop.permute.xlu0 %789
    %793 = vset.pattern.permute.xlu0 0
    %794 = vperm.xlu0 %793, %v784
    %v795 = vpop.permute.xlu0 %794
    %798 = vset.pattern.permute.xlu0 0
    %799 = vperm.xlu0 %798, %v785
    %v800 = vpop.permute.xlu0 %799
    %803 = vset.pattern.permute.xlu0 0
    %804 = vperm.xlu0 %803, %v786
    %v805 = vpop.permute.xlu0 %804
    %807 = vmatpush.msra.mxu0 %v721
    %808 = vmatpush.msra.mxu0 %v720
    %809 = vmatpush.msra.mxu0 %v719
    %810 = vmatpush.msra.mxu0 %v718
    %811 = vmatpush.msra.mxu0 %v717
    %812 = vmatpush.msra.mxu0 %v716
    %813 = vmatpush.msra.mxu0 %v715
    %814 = vmatpush.msra.mxu0 %v714
    %815 = vmatpush.msra.mxu0 %v713
    %816 = vmatpush.msra.mxu0 %v712
    %817 = vmatpush.msra.mxu0 %v711
    %818 = vmatpush.msra.mxu0 %v710
    %819 = vmatpush.msra.mxu0 %v709
    %820 = vmatpush.msra.mxu0 %v708
    %821 = vmatpush.msra.mxu0 %v707
    %822 = vmatpush.msra.mxu0 %v706
    %823 = vmatmul.f32.gmra.mxu0 %v779
    %v824 = vpop.f32.mrf.mxu0
    %v825 = vadd.f32 %v790, %v824
    %826 = vmatmul.f32.gmra.mxu0 %v780
    %v827 = vpop.f32.mrf.mxu0
    %v828 = vadd.f32 %v795, %v827
    %829 = vmatmul.f32.gmra.mxu0 %v781
    %v830 = vpop.f32.mrf.mxu0
    %v831 = vadd.f32 %v800, %v830
    %832 = vmatmul.f32.gmra.mxu0 %v782
    %v833 = vpop.f32.mrf.mxu0
    %v834 = vadd.f32 %v805, %v833
    %835 = vdwg.mxu0
    %v836 = vmax.f32 %v825, 0.0
    %v837 = vmax.f32 %v828, 0.0
    %v838 = vmax.f32 %v831, 0.0
    %v839 = vmax.f32 %v834, 0.0
    %v840 = vand.u32 2147483647, %v825
    %v841 = vand.u32 2147483647, %v828
    %v842 = vand.u32 2147483647, %v831
    %v843 = vand.u32 2147483647, %v834
    %v844 = vsub.f32 0.0, %v840
    %v845 = vsub.f32 0.0, %v841
    %v846 = vsub.f32 0.0, %v842
    %v847 = vsub.f32 0.0, %v843
    %v848 = vmul.f32 %v844, 1.442695
    %v849 = vpow.pop %v848
    %v850 = vmul.f32 %v845, 1.442695
    %v851 = vpow.pop %v850
    %v852 = vmul.f32 %v846, 1.442695
    %v853 = vpow.pop %v852
    %v854 = vmul.f32 %v847, 1.442695
    %v855 = vpow.pop %v854
    %v856 = vadd.f32 %v849, 1.0
    %v857 = vlog2.pop %v856
    %v858 = vmul.f32 %v857, 0.6931472
    %v859 = vmul.f32 -0.5, %v849
    %v860 = vadd.f32 %v859, 1.0
    %v861 = vmul.f32 %v860, %v849
    %v862 = vand.u32 2147483647, %v849
    %vm863 = vcmp.lt.f32.partialorder %v862, 0.0004427343
    %v864 = vsel %vm863, %v861, %v858
    %v865 = vadd.f32 %v851, 1.0
    %v866 = vlog2.pop %v865
    %v867 = vmul.f32 %v866, 0.6931472
    %v868 = vmul.f32 -0.5, %v851
    %v869 = vadd.f32 %v868, 1.0
    %v870 = vmul.f32 %v869, %v851
    %v871 = vand.u32 2147483647, %v851
    %vm872 = vcmp.lt.f32.partialorder %v871, 0.0004427343
    %v873 = vsel %vm872, %v870, %v867
    %v874 = vadd.f32 %v853, 1.0
    %v875 = vlog2.pop %v874
    %v876 = vmul.f32 %v875, 0.6931472
    %v877 = vmul.f32 -0.5, %v853
    %v878 = vadd.f32 %v877, 1.0
    %v879 = vmul.f32 %v878, %v853
    %v880 = vand.u32 2147483647, %v853
    %vm881 = vcmp.lt.f32.partialorder %v880, 0.0004427343
    %v882 = vsel %vm881, %v879, %v876
    %v883 = vadd.f32 %v855, 1.0
    %v884 = vlog2.pop %v883
    %v885 = vmul.f32 %v884, 0.6931472
    %v886 = vmul.f32 -0.5, %v855
    %v887 = vadd.f32 %v886, 1.0
    %v888 = vmul.f32 %v887, %v855
    %v889 = vand.u32 2147483647, %v855
    %vm890 = vcmp.lt.f32.partialorder %v889, 0.0004427343
    %v891 = vsel %vm890, %v888, %v885
    %v892 = vadd.f32 %v836, %v864
    %v893 = vadd.f32 %v837, %v873
    %v894 = vadd.f32 %v838, %v882
    %v895 = vadd.f32 %v839, %v891
    %v896 = vadd.f32 %v892, 1e-08
    %v897 = vadd.f32 %v893, 1e-08
    %v898 = vadd.f32 %v894, 1e-08
    %v899 = vadd.f32 %v895, 1e-08
    %v900 = vrsqrt.pop %v896
    %v901 = vmul.f32 %v900, %v896
    %v902 = vmul.f32 %v901, %v900
    %v903 = vmul.f32 0.5, %v902
    %v904 = vsub.f32 1.5, %v903
    %v905 = vmul.f32 %v900, %v904
    %v906 = vmul.f32 %v896, %v905
    %vm907 = vcmp.eq.f32.partialorder %v896, inf
    %v908 = vsel %vm907, %v896, %v906
    %vm909 = vcmp.eq.f32.partialorder %v896, 0.0
    %v910 = vand.u32 %v896, 2147483648
    %v911 = vsel %vm909, %v910, %v908
    %v912 = vrsqrt.pop %v897
    %v913 = vmul.f32 %v912, %v897
    %v914 = vmul.f32 %v913, %v912
    %v915 = vmul.f32 0.5, %v914
    %v916 = vsub.f32 1.5, %v915
    %v917 = vmul.f32 %v912, %v916
    %v918 = vmul.f32 %v897, %v917
    %vm919 = vcmp.eq.f32.partialorder %v897, inf
    %v920 = vsel %vm919, %v897, %v918
    %vm921 = vcmp.eq.f32.partialorder %v897, 0.0
    %v922 = vand.u32 %v897, 2147483648
    %v923 = vsel %vm921, %v922, %v920
    %v924 = vrsqrt.pop %v898
    %v925 = vmul.f32 %v924, %v898
    %v926 = vmul.f32 %v925, %v924
    %v927 = vmul.f32 0.5, %v926
    %v928 = vsub.f32 1.5, %v927
    %v929 = vmul.f32 %v924, %v928
    %v930 = vmul.f32 %v898, %v929
    %vm931 = vcmp.eq.f32.partialorder %v898, inf
    %v932 = vsel %vm931, %v898, %v930
    %vm933 = vcmp.eq.f32.partialorder %v898, 0.0
    %v934 = vand.u32 %v898, 2147483648
    %v935 = vsel %vm933, %v934, %v932
    %v936 = vrsqrt.pop %v899
    %v937 = vmul.f32 %v936, %v899
    %v938 = vmul.f32 %v937, %v936
    %v939 = vmul.f32 0.5, %v938
    %v940 = vsub.f32 1.5, %v939
    %v941 = vmul.f32 %v936, %v940
    %v942 = vmul.f32 %v899, %v941
    %vm943 = vcmp.eq.f32.partialorder %v899, inf
    %v944 = vsel %vm943, %v899, %v942
    %vm945 = vcmp.eq.f32.partialorder %v899, 0.0
    %v946 = vand.u32 %v899, 2147483648
    %v947 = vsel %vm945, %v946, %v944
    %v948 = vld [vmem:[%s1] sm:$0xff]
    %v949 = vld [vmem:[%s1 + $0x8] sm:$0xff]
    %v950 = vld [vmem:[%s1 + $0x10] sm:$0xff]
    %v951 = vld [vmem:[%s1 + $0x18] sm:$0xff]
    %v952 = vmul.f32 %v911, %v948
    %v953 = vmul.f32 %v923, %v949
    %v954 = vmul.f32 %v935, %v950
    %v955 = vmul.f32 %v947, %v951
    %v956 = vadd.f32 %v768, %v952
    %v957 = vadd.f32 %v771, %v953
    %v958 = vadd.f32 %v774, %v954
    %v959 = vadd.f32 %v777, %v955
    %v960 = vld [vmem:[%s10] sm:$0xff]
    %v961 = vld [vmem:[%s10 + $0x8] sm:$0xff]
    %v962 = vld [vmem:[%s10 + $0x10] sm:$0xff]
    %v963 = vld [vmem:[%s10 + $0x18] sm:$0xff]
    %v964 = vld [vmem:[%s10 + $0x20] sm:$0xff]
    %v965 = vld [vmem:[%s10 + $0x28] sm:$0xff]
    %v966 = vld [vmem:[%s10 + $0x30] sm:$0xff]
    %v967 = vld [vmem:[%s10 + $0x38] sm:$0xff]
    %v968 = vld [vmem:[%s10 + $0x40] sm:$0xff]
    %v969 = vld [vmem:[%s10 + $0x48] sm:$0xff]
    %v970 = vld [vmem:[%s10 + $0x50] sm:$0xff]
    %v971 = vld [vmem:[%s10 + $0x58] sm:$0xff]
    %v972 = vld [vmem:[%s10 + $0x60] sm:$0xff]
    %v973 = vld [vmem:[%s10 + $0x68] sm:$0xff]
    %v974 = vld [vmem:[%s10 + $0x70] sm:$0xff]
    %v975 = vld [vmem:[%s10 + $0x78] sm:$0xff]
    %v976 = vld [vmem:[%s11] sm:$0xff]
    %v977 = vld [vmem:[%s11 + $0x8] sm:$0xff]
    %v978 = vld [vmem:[%s11 + $0x10] sm:$0xff]
    %v979 = vld [vmem:[%s11 + $0x18] sm:$0xff]
    %v980 = vld [vmem:[%s11 + $0x20] sm:$0xff]
    %v981 = vld [vmem:[%s11 + $0x28] sm:$0xff]
    %v982 = vld [vmem:[%s11 + $0x30] sm:$0xff]
    %v983 = vld [vmem:[%s11 + $0x38] sm:$0xff]
    %v984 = vld [vmem:[%s11 + $0x40] sm:$0xff]
    %v985 = vld [vmem:[%s11 + $0x48] sm:$0xff]
    %v986 = vld [vmem:[%s11 + $0x50] sm:$0xff]
    %v987 = vld [vmem:[%s11 + $0x58] sm:$0xff]
    %v988 = vld [vmem:[%s11 + $0x60] sm:$0xff]
    %v989 = vld [vmem:[%s11 + $0x68] sm:$0xff]
    %v990 = vld [vmem:[%s11 + $0x70] sm:$0xff]
    %v991 = vld [vmem:[%s11 + $0x78] sm:$0xff]
    %993 = vset.pattern.permute.xlu0 0
    %994 = vperm.xlu0 %993, %v976
    %v995 = vpop.permute.xlu0 %994
    %998 = vset.pattern.permute.xlu0 0
    %999 = vperm.xlu0 %998, %v977
    %v1000 = vpop.permute.xlu0 %999
    %1003 = vset.pattern.permute.xlu0 0
    %1004 = vperm.xlu0 %1003, %v978
    %v1005 = vpop.permute.xlu0 %1004
    %1008 = vset.pattern.permute.xlu0 0
    %1009 = vperm.xlu0 %1008, %v979
    %v1010 = vpop.permute.xlu0 %1009
    %1013 = vset.pattern.permute.xlu0 0
    %1014 = vperm.xlu0 %1013, %v980
    %v1015 = vpop.permute.xlu0 %1014
    %1018 = vset.pattern.permute.xlu0 0
    %1019 = vperm.xlu0 %1018, %v981
    %v1020 = vpop.permute.xlu0 %1019
    %1023 = vset.pattern.permute.xlu0 0
    %1024 = vperm.xlu0 %1023, %v982
    %v1025 = vpop.permute.xlu0 %1024
    %1028 = vset.pattern.permute.xlu0 0
    %1029 = vperm.xlu0 %1028, %v983
    %v1030 = vpop.permute.xlu0 %1029
    %1033 = vset.pattern.permute.xlu0 0
    %1034 = vperm.xlu0 %1033, %v984
    %v1035 = vpop.permute.xlu0 %1034
    %1038 = vset.pattern.permute.xlu0 0
    %1039 = vperm.xlu0 %1038, %v985
    %v1040 = vpop.permute.xlu0 %1039
    %1043 = vset.pattern.permute.xlu0 0
    %1044 = vperm.xlu0 %1043, %v986
    %v1045 = vpop.permute.xlu0 %1044
    %1048 = vset.pattern.permute.xlu0 0
    %1049 = vperm.xlu0 %1048, %v987
    %v1050 = vpop.permute.xlu0 %1049
    %1053 = vset.pattern.permute.xlu0 0
    %1054 = vperm.xlu0 %1053, %v988
    %v1055 = vpop.permute.xlu0 %1054
    %1058 = vset.pattern.permute.xlu0 0
    %1059 = vperm.xlu0 %1058, %v989
    %v1060 = vpop.permute.xlu0 %1059
    %1063 = vset.pattern.permute.xlu0 0
    %1064 = vperm.xlu0 %1063, %v990
    %v1065 = vpop.permute.xlu0 %1064
    %1068 = vset.pattern.permute.xlu0 0
    %1069 = vperm.xlu0 %1068, %v991
    %v1070 = vpop.permute.xlu0 %1069
    %vm1072 = vcmask 261120
    %v1074 = vsel %vm1072, %v960, 0
    %v1077 = vsel %vm1072, %v961, 0
    %v1080 = vsel %vm1072, %v962, 0
    %v1083 = vsel %vm1072, %v963, 0
    %v1086 = vsel %vm1072, %v964, 0
    %v1089 = vsel %vm1072, %v965, 0
    %v1092 = vsel %vm1072, %v966, 0
    %v1095 = vsel %vm1072, %v967, 0
    %v1098 = vsel %vm1072, %v968, 0
    %v1101 = vsel %vm1072, %v969, 0
    %v1104 = vsel %vm1072, %v970, 0
    %v1107 = vsel %vm1072, %v971, 0
    %v1110 = vsel %vm1072, %v972, 0
    %v1113 = vsel %vm1072, %v973, 0
    %v1116 = vsel %vm1072, %v974, 0
    %v1119 = vsel %vm1072, %v975, 0
    %1121 = vmatpush.msra.mxu0 0.0
    %1122 = vmatpush.msra.mxu0 0.0
    %1123 = vmatpush.msra.mxu0 0.0
    %1124 = vmatpush.msra.mxu0 0.0
    %1125 = vmatpush.msra.mxu0 0.0
    %1126 = vmatpush.msra.mxu0 0.0
    %1127 = vmatpush.msra.mxu0 0.0
    %1128 = vmatpush.msra.mxu0 0.0
    %1129 = vmatpush.msra.mxu0 0.0
    %1130 = vmatpush.msra.mxu0 0.0
    %1131 = vmatpush.msra.mxu0 0.0
    %1132 = vmatpush.msra.mxu0 0.0
    %1133 = vmatpush.msra.mxu0 %v959
    %1134 = vmatpush.msra.mxu0 %v958
    %1135 = vmatpush.msra.mxu0 %v957
    %1136 = vmatpush.msra.mxu0 %v956
    %1137 = vmatmul.f32.gmra.mxu0 %v1074
    %v1138 = vpop.f32.mrf.mxu0
    %v1139 = vadd.f32 %v995, %v1138
    %1140 = vmatmul.f32.gmra.mxu0 %v1077
    %v1141 = vpop.f32.mrf.mxu0
    %v1142 = vadd.f32 %v1000, %v1141
    %1143 = vmatmul.f32.gmra.mxu0 %v1080
    %v1144 = vpop.f32.mrf.mxu0
    %v1145 = vadd.f32 %v1005, %v1144
    %1146 = vmatmul.f32.gmra.mxu0 %v1083
    %v1147 = vpop.f32.mrf.mxu0
    %v1148 = vadd.f32 %v1010, %v1147
    %1149 = vmatmul.f32.gmra.mxu0 %v1086
    %v1150 = vpop.f32.mrf.mxu0
    %v1151 = vadd.f32 %v1015, %v1150
    %1152 = vmatmul.f32.gmra.mxu0 %v1089
    %v1153 = vpop.f32.mrf.mxu0
    %v1154 = vadd.f32 %v1020, %v1153
    %1155 = vmatmul.f32.gmra.mxu0 %v1092
    %v1156 = vpop.f32.mrf.mxu0
    %v1157 = vadd.f32 %v1025, %v1156
    %1158 = vmatmul.f32.gmra.mxu0 %v1095
    %v1159 = vpop.f32.mrf.mxu0
    %v1160 = vadd.f32 %v1030, %v1159
    %1161 = vmatmul.f32.gmra.mxu0 %v1098
    %v1162 = vpop.f32.mrf.mxu0
    %v1163 = vadd.f32 %v1035, %v1162
    %1164 = vmatmul.f32.gmra.mxu0 %v1101
    %v1165 = vpop.f32.mrf.mxu0
    %v1166 = vadd.f32 %v1040, %v1165
    %1167 = vmatmul.f32.gmra.mxu0 %v1104
    %v1168 = vpop.f32.mrf.mxu0
    %v1169 = vadd.f32 %v1045, %v1168
    %1170 = vmatmul.f32.gmra.mxu0 %v1107
    %v1171 = vpop.f32.mrf.mxu0
    %v1172 = vadd.f32 %v1050, %v1171
    %1173 = vmatmul.f32.gmra.mxu0 %v1110
    %v1174 = vpop.f32.mrf.mxu0
    %v1175 = vadd.f32 %v1055, %v1174
    %1176 = vmatmul.f32.gmra.mxu0 %v1113
    %v1177 = vpop.f32.mrf.mxu0
    %v1178 = vadd.f32 %v1060, %v1177
    %1179 = vmatmul.f32.gmra.mxu0 %v1116
    %v1180 = vpop.f32.mrf.mxu0
    %v1181 = vadd.f32 %v1065, %v1180
    %1182 = vmatmul.f32.gmra.mxu0 %v1119
    %v1183 = vpop.f32.mrf.mxu0
    %v1184 = vadd.f32 %v1070, %v1183
    %1185 = vdwg.mxu0
    %v1186 = vmax.f32 %v1139, 0.0
    %v1187 = vmax.f32 %v1142, 0.0
    %v1188 = vmax.f32 %v1145, 0.0
    %v1189 = vmax.f32 %v1148, 0.0
    %v1190 = vmax.f32 %v1151, 0.0
    %v1191 = vmax.f32 %v1154, 0.0
    %v1192 = vmax.f32 %v1157, 0.0
    %v1193 = vmax.f32 %v1160, 0.0
    %v1194 = vmax.f32 %v1163, 0.0
    %v1195 = vmax.f32 %v1166, 0.0
    %v1196 = vmax.f32 %v1169, 0.0
    %v1197 = vmax.f32 %v1172, 0.0
    %v1198 = vmax.f32 %v1175, 0.0
    %v1199 = vmax.f32 %v1178, 0.0
    %v1200 = vmax.f32 %v1181, 0.0
    %v1201 = vmax.f32 %v1184, 0.0
    %v1202 = vld [vmem:[%s12] sm:$0xff]
    %v1203 = vld [vmem:[%s12 + $0x8] sm:$0xff]
    %v1204 = vld [vmem:[%s12 + $0x10] sm:$0xff]
    %v1205 = vld [vmem:[%s12 + $0x18] sm:$0xff]
    %v1206 = vld [vmem:[%s12 + $0x20] sm:$0xff]
    %v1207 = vld [vmem:[%s12 + $0x28] sm:$0xff]
    %v1208 = vld [vmem:[%s12 + $0x30] sm:$0xff]
    %v1209 = vld [vmem:[%s12 + $0x38] sm:$0xff]
    %v1210 = vld [vmem:[%s15] sm:$0xff]
    %v1211 = vld [vmem:[%s15 + $0x8] sm:$0xff]
    %v1212 = vld [vmem:[%s15 + $0x10] sm:$0xff]
    %v1213 = vld [vmem:[%s15 + $0x18] sm:$0xff]
    %v1214 = vld [vmem:[%s15 + $0x20] sm:$0xff]
    %v1215 = vld [vmem:[%s15 + $0x28] sm:$0xff]
    %v1216 = vld [vmem:[%s15 + $0x30] sm:$0xff]
    %v1217 = vld [vmem:[%s15 + $0x38] sm:$0xff]
    %1219 = vset.pattern.permute.xlu0 0
    %1220 = vperm.xlu0 %1219, %v1210
    %v1221 = vpop.permute.xlu0 %1220
    %1224 = vset.pattern.permute.xlu0 0
    %1225 = vperm.xlu0 %1224, %v1211
    %v1226 = vpop.permute.xlu0 %1225
    %1229 = vset.pattern.permute.xlu0 0
    %1230 = vperm.xlu0 %1229, %v1212
    %v1231 = vpop.permute.xlu0 %1230
    %1234 = vset.pattern.permute.xlu0 0
    %1235 = vperm.xlu0 %1234, %v1213
    %v1236 = vpop.permute.xlu0 %1235
    %1239 = vset.pattern.permute.xlu0 0
    %1240 = vperm.xlu0 %1239, %v1214
    %v1241 = vpop.permute.xlu0 %1240
    %1244 = vset.pattern.permute.xlu0 0
    %1245 = vperm.xlu0 %1244, %v1215
    %v1246 = vpop.permute.xlu0 %1245
    %1249 = vset.pattern.permute.xlu0 0
    %1250 = vperm.xlu0 %1249, %v1216
    %v1251 = vpop.permute.xlu0 %1250
    %1254 = vset.pattern.permute.xlu0 0
    %1255 = vperm.xlu0 %1254, %v1217
    %v1256 = vpop.permute.xlu0 %1255
    %1258 = vmatpush.msra.mxu0 %v1201
    %1259 = vmatpush.msra.mxu0 %v1200
    %1260 = vmatpush.msra.mxu0 %v1199
    %1261 = vmatpush.msra.mxu0 %v1198
    %1262 = vmatpush.msra.mxu0 %v1197
    %1263 = vmatpush.msra.mxu0 %v1196
    %1264 = vmatpush.msra.mxu0 %v1195
    %1265 = vmatpush.msra.mxu0 %v1194
    %1266 = vmatpush.msra.mxu0 %v1193
    %1267 = vmatpush.msra.mxu0 %v1192
    %1268 = vmatpush.msra.mxu0 %v1191
    %1269 = vmatpush.msra.mxu0 %v1190
    %1270 = vmatpush.msra.mxu0 %v1189
    %1271 = vmatpush.msra.mxu0 %v1188
    %1272 = vmatpush.msra.mxu0 %v1187
    %1273 = vmatpush.msra.mxu0 %v1186
    %1274 = vmatmul.f32.gmra.mxu0 %v1202
    %v1275 = vpop.f32.mrf.mxu0
    %v1276 = vadd.f32 %v1221, %v1275
    %1277 = vmatmul.f32.gmra.mxu0 %v1203
    %v1278 = vpop.f32.mrf.mxu0
    %v1279 = vadd.f32 %v1226, %v1278
    %1280 = vmatmul.f32.gmra.mxu0 %v1204
    %v1281 = vpop.f32.mrf.mxu0
    %v1282 = vadd.f32 %v1231, %v1281
    %1283 = vmatmul.f32.gmra.mxu0 %v1205
    %v1284 = vpop.f32.mrf.mxu0
    %v1285 = vadd.f32 %v1236, %v1284
    %1286 = vmatmul.f32.gmra.mxu0 %v1206
    %v1287 = vpop.f32.mrf.mxu0
    %v1288 = vadd.f32 %v1241, %v1287
    %1289 = vmatmul.f32.gmra.mxu0 %v1207
    %v1290 = vpop.f32.mrf.mxu0
    %v1291 = vadd.f32 %v1246, %v1290
    %1292 = vmatmul.f32.gmra.mxu0 %v1208
    %v1293 = vpop.f32.mrf.mxu0
    %v1294 = vadd.f32 %v1251, %v1293
    %1295 = vmatmul.f32.gmra.mxu0 %v1209
    %v1296 = vpop.f32.mrf.mxu0
    %v1297 = vadd.f32 %v1256, %v1296
    %1298 = vdwg.mxu0
    %v1299 = vld [vmem:[%s13] sm:$0xff]
    %v1300 = vld [vmem:[%s13 + $0x8] sm:$0xff]
    %v1301 = vld [vmem:[%s13 + $0x10] sm:$0xff]
    %v1302 = vld [vmem:[%s13 + $0x18] sm:$0xff]
    %v1303 = vld [vmem:[%s13 + $0x20] sm:$0xff]
    %v1304 = vld [vmem:[%s13 + $0x28] sm:$0xff]
    %v1305 = vld [vmem:[%s13 + $0x30] sm:$0xff]
    %v1306 = vld [vmem:[%s13 + $0x38] sm:$0xff]
    %v1307 = vld [vmem:[%s16] sm:$0xff]
    %v1308 = vld [vmem:[%s16 + $0x8] sm:$0xff]
    %v1309 = vld [vmem:[%s16 + $0x10] sm:$0xff]
    %v1310 = vld [vmem:[%s16 + $0x18] sm:$0xff]
    %v1311 = vld [vmem:[%s16 + $0x20] sm:$0xff]
    %v1312 = vld [vmem:[%s16 + $0x28] sm:$0xff]
    %v1313 = vld [vmem:[%s16 + $0x30] sm:$0xff]
    %v1314 = vld [vmem:[%s16 + $0x38] sm:$0xff]
    %1316 = vset.pattern.permute.xlu0 0
    %1317 = vperm.xlu0 %1316, %v1307
    %v1318 = vpop.permute.xlu0 %1317
    %1321 = vset.pattern.permute.xlu0 0
    %1322 = vperm.xlu0 %1321, %v1308
    %v1323 = vpop.permute.xlu0 %1322
    %1326 = vset.pattern.permute.xlu0 0
    %1327 = vperm.xlu0 %1326, %v1309
    %v1328 = vpop.permute.xlu0 %1327
    %1331 = vset.pattern.permute.xlu0 0
    %1332 = vperm.xlu0 %1331, %v1310
    %v1333 = vpop.permute.xlu0 %1332
    %1336 = vset.pattern.permute.xlu0 0
    %1337 = vperm.xlu0 %1336, %v1311
    %v1338 = vpop.permute.xlu0 %1337
    %1341 = vset.pattern.permute.xlu0 0
    %1342 = vperm.xlu0 %1341, %v1312
    %v1343 = vpop.permute.xlu0 %1342
    %1346 = vset.pattern.permute.xlu0 0
    %1347 = vperm.xlu0 %1346, %v1313
    %v1348 = vpop.permute.xlu0 %1347
    %1351 = vset.pattern.permute.xlu0 0
    %1352 = vperm.xlu0 %1351, %v1314
    %v1353 = vpop.permute.xlu0 %1352
    %1355 = vmatpush.msra.mxu0 %v1201
    %1356 = vmatpush.msra.mxu0 %v1200
    %1357 = vmatpush.msra.mxu0 %v1199
    %1358 = vmatpush.msra.mxu0 %v1198
    %1359 = vmatpush.msra.mxu0 %v1197
    %1360 = vmatpush.msra.mxu0 %v1196
    %1361 = vmatpush.msra.mxu0 %v1195
    %1362 = vmatpush.msra.mxu0 %v1194
    %1363 = vmatpush.msra.mxu0 %v1193
    %1364 = vmatpush.msra.mxu0 %v1192
    %1365 = vmatpush.msra.mxu0 %v1191
    %1366 = vmatpush.msra.mxu0 %v1190
    %1367 = vmatpush.msra.mxu0 %v1189
    %1368 = vmatpush.msra.mxu0 %v1188
    %1369 = vmatpush.msra.mxu0 %v1187
    %1370 = vmatpush.msra.mxu0 %v1186
    %1371 = vmatmul.f32.gmra.mxu0 %v1299
    %v1372 = vpop.f32.mrf.mxu0
    %v1373 = vadd.f32 %v1318, %v1372
    %1374 = vmatmul.f32.gmra.mxu0 %v1300
    %v1375 = vpop.f32.mrf.mxu0
    %v1376 = vadd.f32 %v1323, %v1375
    %1377 = vmatmul.f32.gmra.mxu0 %v1301
    %v1378 = vpop.f32.mrf.mxu0
    %v1379 = vadd.f32 %v1328, %v1378
    %1380 = vmatmul.f32.gmra.mxu0 %v1302
    %v1381 = vpop.f32.mrf.mxu0
    %v1382 = vadd.f32 %v1333, %v1381
    %1383 = vmatmul.f32.gmra.mxu0 %v1303
    %v1384 = vpop.f32.mrf.mxu0
    %v1385 = vadd.f32 %v1338, %v1384
    %1386 = vmatmul.f32.gmra.mxu0 %v1304
    %v1387 = vpop.f32.mrf.mxu0
    %v1388 = vadd.f32 %v1343, %v1387
    %1389 = vmatmul.f32.gmra.mxu0 %v1305
    %v1390 = vpop.f32.mrf.mxu0
    %v1391 = vadd.f32 %v1348, %v1390
    %1392 = vmatmul.f32.gmra.mxu0 %v1306
    %v1393 = vpop.f32.mrf.mxu0
    %v1394 = vadd.f32 %v1353, %v1393
    %1395 = vdwg.mxu0
    %v1396 = vld [vmem:[%s14] sm:$0xff]
    %v1397 = vld [vmem:[%s14 + $0x8] sm:$0xff]
    %v1398 = vld [vmem:[%s14 + $0x10] sm:$0xff]
    %v1399 = vld [vmem:[%s14 + $0x18] sm:$0xff]
    %v1400 = vld [vmem:[%s14 + $0x20] sm:$0xff]
    %v1401 = vld [vmem:[%s14 + $0x28] sm:$0xff]
    %v1402 = vld [vmem:[%s14 + $0x30] sm:$0xff]
    %v1403 = vld [vmem:[%s14 + $0x38] sm:$0xff]
    %v1404 = vld [vmem:[%s17] sm:$0xff]
    %v1405 = vld [vmem:[%s17 + $0x8] sm:$0xff]
    %v1406 = vld [vmem:[%s17 + $0x10] sm:$0xff]
    %v1407 = vld [vmem:[%s17 + $0x18] sm:$0xff]
    %v1408 = vld [vmem:[%s17 + $0x20] sm:$0xff]
    %v1409 = vld [vmem:[%s17 + $0x28] sm:$0xff]
    %v1410 = vld [vmem:[%s17 + $0x30] sm:$0xff]
    %v1411 = vld [vmem:[%s17 + $0x38] sm:$0xff]
    %1413 = vset.pattern.permute.xlu0 0
    %1414 = vperm.xlu0 %1413, %v1404
    %v1415 = vpop.permute.xlu0 %1414
    %1418 = vset.pattern.permute.xlu0 0
    %1419 = vperm.xlu0 %1418, %v1405
    %v1420 = vpop.permute.xlu0 %1419
    %1423 = vset.pattern.permute.xlu0 0
    %1424 = vperm.xlu0 %1423, %v1406
    %v1425 = vpop.permute.xlu0 %1424
    %1428 = vset.pattern.permute.xlu0 0
    %1429 = vperm.xlu0 %1428, %v1407
    %v1430 = vpop.permute.xlu0 %1429
    %1433 = vset.pattern.permute.xlu0 0
    %1434 = vperm.xlu0 %1433, %v1408
    %v1435 = vpop.permute.xlu0 %1434
    %1438 = vset.pattern.permute.xlu0 0
    %1439 = vperm.xlu0 %1438, %v1409
    %v1440 = vpop.permute.xlu0 %1439
    %1443 = vset.pattern.permute.xlu0 0
    %1444 = vperm.xlu0 %1443, %v1410
    %v1445 = vpop.permute.xlu0 %1444
    %1448 = vset.pattern.permute.xlu0 0
    %1449 = vperm.xlu0 %1448, %v1411
    %v1450 = vpop.permute.xlu0 %1449
    %1452 = vmatpush.msra.mxu0 %v1201
    %1453 = vmatpush.msra.mxu0 %v1200
    %1454 = vmatpush.msra.mxu0 %v1199
    %1455 = vmatpush.msra.mxu0 %v1198
    %1456 = vmatpush.msra.mxu0 %v1197
    %1457 = vmatpush.msra.mxu0 %v1196
    %1458 = vmatpush.msra.mxu0 %v1195
    %1459 = vmatpush.msra.mxu0 %v1194
    %1460 = vmatpush.msra.mxu0 %v1193
    %1461 = vmatpush.msra.mxu0 %v1192
    %1462 = vmatpush.msra.mxu0 %v1191
    %1463 = vmatpush.msra.mxu0 %v1190
    %1464 = vmatpush.msra.mxu0 %v1189
    %1465 = vmatpush.msra.mxu0 %v1188
    %1466 = vmatpush.msra.mxu0 %v1187
    %1467 = vmatpush.msra.mxu0 %v1186
    %1468 = vmatmul.f32.gmra.mxu0 %v1396
    %v1469 = vpop.f32.mrf.mxu0
    %v1470 = vadd.f32 %v1415, %v1469
    %1471 = vmatmul.f32.gmra.mxu0 %v1397
    %v1472 = vpop.f32.mrf.mxu0
    %v1473 = vadd.f32 %v1420, %v1472
    %1474 = vmatmul.f32.gmra.mxu0 %v1398
    %v1475 = vpop.f32.mrf.mxu0
    %v1476 = vadd.f32 %v1425, %v1475
    %1477 = vmatmul.f32.gmra.mxu0 %v1399
    %v1478 = vpop.f32.mrf.mxu0
    %v1479 = vadd.f32 %v1430, %v1478
    %1480 = vmatmul.f32.gmra.mxu0 %v1400
    %v1481 = vpop.f32.mrf.mxu0
    %v1482 = vadd.f32 %v1435, %v1481
    %1483 = vmatmul.f32.gmra.mxu0 %v1401
    %v1484 = vpop.f32.mrf.mxu0
    %v1485 = vadd.f32 %v1440, %v1484
    %1486 = vmatmul.f32.gmra.mxu0 %v1402
    %v1487 = vpop.f32.mrf.mxu0
    %v1488 = vadd.f32 %v1445, %v1487
    %1489 = vmatmul.f32.gmra.mxu0 %v1403
    %v1490 = vpop.f32.mrf.mxu0
    %v1491 = vadd.f32 %v1450, %v1490
    %1492 = vdwg.mxu0
    %1493 = vst.msk [vmem:[#allocation3] sm:$0xff] %vm489, %v1276
    %1494 = vst.msk [vmem:[#allocation3 + $0x8] sm:$0xff] %vm489, %v1279
    %1495 = vst.msk [vmem:[#allocation3 + $0x10] sm:$0xff] %vm489, %v1282
    %1496 = vst.msk [vmem:[#allocation3 + $0x18] sm:$0xff] %vm489, %v1285
    %1497 = vst.msk [vmem:[#allocation3 + $0x20] sm:$0xff] %vm489, %v1288
    %1498 = vst.msk [vmem:[#allocation3 + $0x28] sm:$0xff] %vm489, %v1291
    %1499 = vst.msk [vmem:[#allocation3 + $0x30] sm:$0xff] %vm489, %v1294
    %1500 = vst.msk [vmem:[#allocation3 + $0x38] sm:$0xff] %vm489, %v1297
    %1509 = vrot.lane.b32.xlu0 %v1373, 1
    %v1510 = vpop.permute.xlu0 %1509
    %1511 = vrot.lane.b32.xlu0 %v1376, 1
    %v1512 = vpop.permute.xlu0 %1511
    %1513 = vrot.lane.b32.xlu0 %v1379, 1
    %v1514 = vpop.permute.xlu0 %1513
    %1515 = vrot.lane.b32.xlu0 %v1382, 1
    %v1516 = vpop.permute.xlu0 %1515
    %1517 = vrot.lane.b32.xlu0 %v1385, 1
    %v1518 = vpop.permute.xlu0 %1517
    %1519 = vrot.lane.b32.xlu0 %v1388, 1
    %v1520 = vpop.permute.xlu0 %1519
    %1521 = vrot.lane.b32.xlu0 %v1391, 1
    %v1522 = vpop.permute.xlu0 %1521
    %1523 = vrot.lane.b32.xlu0 %v1394, 1
    %v1524 = vpop.permute.xlu0 %1523
    %1533 = vst.msk [vmem:[#allocation3] sm:$0xff] %vm689, %v1510
    %1534 = vst.msk [vmem:[#allocation3 + $0x8] sm:$0xff] %vm689, %v1512
    %1535 = vst.msk [vmem:[#allocation3 + $0x10] sm:$0xff] %vm689, %v1514
    %1536 = vst.msk [vmem:[#allocation3 + $0x18] sm:$0xff] %vm689, %v1516
    %1537 = vst.msk [vmem:[#allocation3 + $0x20] sm:$0xff] %vm689, %v1518
    %1538 = vst.msk [vmem:[#allocation3 + $0x28] sm:$0xff] %vm689, %v1520
    %1539 = vst.msk [vmem:[#allocation3 + $0x30] sm:$0xff] %vm689, %v1522
    %1540 = vst.msk [vmem:[#allocation3 + $0x38] sm:$0xff] %vm689, %v1524
    %1549 = vrot.lane.b32.xlu0 %v1470, 2
    %v1550 = vpop.permute.xlu0 %1549
    %1551 = vrot.lane.b32.xlu0 %v1473, 2
    %v1552 = vpop.permute.xlu0 %1551
    %1553 = vrot.lane.b32.xlu0 %v1476, 2
    %v1554 = vpop.permute.xlu0 %1553
    %1555 = vrot.lane.b32.xlu0 %v1479, 2
    %v1556 = vpop.permute.xlu0 %1555
    %1557 = vrot.lane.b32.xlu0 %v1482, 2
    %v1558 = vpop.permute.xlu0 %1557
    %1559 = vrot.lane.b32.xlu0 %v1485, 2
    %v1560 = vpop.permute.xlu0 %1559
    %1561 = vrot.lane.b32.xlu0 %v1488, 2
    %v1562 = vpop.permute.xlu0 %1561
    %1563 = vrot.lane.b32.xlu0 %v1491, 2
    %v1564 = vpop.permute.xlu0 %1563
    %vm1573 = vcmask 23568
    %1574 = vst.msk [vmem:[#allocation3] sm:$0xff] %vm1573, %v1550
    %1575 = vst.msk [vmem:[#allocation3 + $0x8] sm:$0xff] %vm1573, %v1552
    %1576 = vst.msk [vmem:[#allocation3 + $0x10] sm:$0xff] %vm1573, %v1554
    %1577 = vst.msk [vmem:[#allocation3 + $0x18] sm:$0xff] %vm1573, %v1556
    %1578 = vst.msk [vmem:[#allocation3 + $0x20] sm:$0xff] %vm1573, %v1558
    %1579 = vst.msk [vmem:[#allocation3 + $0x28] sm:$0xff] %vm1573, %v1560
    %1580 = vst.msk [vmem:[#allocation3 + $0x30] sm:$0xff] %vm1573, %v1562
    %1581 = vst.msk [vmem:[#allocation3 + $0x38] sm:$0xff] %vm1573, %v1564
    %v1582 = vld [vmem:[#allocation3] sm:$0xff]
    %v1583 = vld [vmem:[#allocation3 + $0x8] sm:$0xff]
    %v1584 = vld [vmem:[#allocation3 + $0x10] sm:$0xff]
    %v1585 = vld [vmem:[#allocation3 + $0x18] sm:$0xff]
    %v1586 = vld [vmem:[#allocation3 + $0x20] sm:$0xff]
    %v1587 = vld [vmem:[#allocation3 + $0x28] sm:$0xff]
    %v1588 = vld [vmem:[#allocation3 + $0x30] sm:$0xff]
    %v1589 = vld [vmem:[#allocation3 + $0x38] sm:$0xff]
    %v1590 = vld [vmem:[%s0] sm:$0x7]
    %v1592 = vsel %vm153, %v1582, 0
    %v1595 = vsel %vm153, %v1583, 0
    %v1598 = vsel %vm153, %v1584, 0
    %v1601 = vsel %vm153, %v1585, 0
    %v1604 = vsel %vm153, %v1586, 0
    %v1607 = vsel %vm153, %v1587, 0
    %v1610 = vsel %vm153, %v1588, 0
    %v1613 = vsel %vm153, %v1589, 0
    %v1616 = vsel %vm178, %v1590, 0
    %1618 = vmatpush.msra.mxu0 0.0
    %1619 = vmatpush.msra.mxu0 0.0
    %1620 = vmatpush.msra.mxu0 0.0
    %1621 = vmatpush.msra.mxu0 0.0
    %1622 = vmatpush.msra.mxu0 0.0
    %1623 = vmatpush.msra.mxu0 0.0
    %1624 = vmatpush.msra.mxu0 0.0
    %1625 = vmatpush.msra.mxu0 0.0
    %1626 = vmatpush.msra.mxu0 0.0
    %1627 = vmatpush.msra.mxu0 0.0
    %1628 = vmatpush.msra.mxu0 0.0
    %1629 = vmatpush.msra.mxu0 0.0
    %1630 = vmatpush.msra.mxu0 0.0
    %1631 = vmatpush.msra.mxu0 0.0
    %1632 = vmatpush.msra.mxu0 0.0
    %1633 = vmatpush.msra.mxu0 %v1616
    %1634 = vmatmul.f32.gmra.mxu0 %v1592
    %v1635 = vpop.f32.mrf.mxu0
    %v1636 = vadd.f32 0.0, %v1635
    %1637 = vmatmul.f32.gmra.mxu0 %v1595
    %v1638 = vpop.f32.mrf.mxu0
    %v1639 = vadd.f32 0.0, %v1638
    %1640 = vmatmul.f32.gmra.mxu0 %v1598
    %v1641 = vpop.f32.mrf.mxu0
    %v1642 = vadd.f32 0.0, %v1641
    %1643 = vmatmul.f32.gmra.mxu0 %v1601
    %v1644 = vpop.f32.mrf.mxu0
    %v1645 = vadd.f32 0.0, %v1644
    %1646 = vmatmul.f32.gmra.mxu0 %v1604
    %v1647 = vpop.f32.mrf.mxu0
    %v1648 = vadd.f32 0.0, %v1647
    %1649 = vmatmul.f32.gmra.mxu0 %v1607
    %v1650 = vpop.f32.mrf.mxu0
    %v1651 = vadd.f32 0.0, %v1650
    %1652 = vmatmul.f32.gmra.mxu0 %v1610
    %v1653 = vpop.f32.mrf.mxu0
    %v1654 = vadd.f32 0.0, %v1653
    %1655 = vmatmul.f32.gmra.mxu0 %v1613
    %v1656 = vpop.f32.mrf.mxu0
    %v1657 = vadd.f32 0.0, %v1656
    %1658 = vdwg.mxu0
    %v1659 = vmul.f32 %v1582, %v1582
    %v1660 = vmul.f32 %v1583, %v1583
    %v1661 = vmul.f32 %v1584, %v1584
    %v1662 = vmul.f32 %v1585, %v1585
    %v1663 = vmul.f32 %v1586, %v1586
    %v1664 = vmul.f32 %v1587, %v1587
    %v1665 = vmul.f32 %v1588, %v1588
    %v1666 = vmul.f32 %v1589, %v1589
    %v1667 = vsel %vm153, %v1659, 0.0
    %1668 = vadd.xlane.f32.xlu0 %v1667
    %v1669 = vpop.xlane.xlu0 %1668
    %v1670 = vsel %vm153, %v1660, 0.0
    %1671 = vadd.xlane.f32.xlu0 %v1670
    %v1672 = vpop.xlane.xlu0 %1671
    %v1673 = vsel %vm153, %v1661, 0.0
    %1674 = vadd.xlane.f32.xlu0 %v1673
    %v1675 = vpop.xlane.xlu0 %1674
    %v1676 = vsel %vm153, %v1662, 0.0
    %1677 = vadd.xlane.f32.xlu0 %v1676
    %v1678 = vpop.xlane.xlu0 %1677
    %v1679 = vsel %vm153, %v1663, 0.0
    %1680 = vadd.xlane.f32.xlu0 %v1679
    %v1681 = vpop.xlane.xlu0 %1680
    %v1682 = vsel %vm153, %v1664, 0.0
    %1683 = vadd.xlane.f32.xlu0 %v1682
    %v1684 = vpop.xlane.xlu0 %1683
    %v1685 = vsel %vm153, %v1665, 0.0
    %1686 = vadd.xlane.f32.xlu0 %v1685
    %v1687 = vpop.xlane.xlu0 %1686
    %v1688 = vsel %vm153, %v1666, 0.0
    %1689 = vadd.xlane.f32.xlu0 %v1688
    %v1690 = vpop.xlane.xlu0 %1689
    %v1691 = vmul.f32 %v1590, %v1590
    %vm1692 = vcmask 518144
    %v1693 = vsel %vm1692, %v1691, 0.0
    %v1694 = vrot.slane %v1693, 4
    %v1695 = vadd.f32 %v1693, %v1694
    %v1696 = vrot.slane %v1695, 2
    %v1697 = vadd.f32 %v1695, %v1696
    %v1698 = vrot.slane %v1697, 1
    %v1699 = vadd.f32 %v1697, %v1698
    %v1700 = vmul.f32 %v1636, 2.0
    %v1701 = vmul.f32 %v1639, 2.0
    %v1702 = vmul.f32 %v1642, 2.0
    %v1703 = vmul.f32 %v1645, 2.0
    %v1704 = vmul.f32 %v1648, 2.0
    %v1705 = vmul.f32 %v1651, 2.0
    %v1706 = vmul.f32 %v1654, 2.0
    %v1707 = vmul.f32 %v1657, 2.0
    %v1708 = vsub.f32 %v1669, %v1700
    %v1709 = vsub.f32 %v1672, %v1701
    %v1710 = vsub.f32 %v1675, %v1702
    %v1711 = vsub.f32 %v1678, %v1703
    %v1712 = vsub.f32 %v1681, %v1704
    %v1713 = vsub.f32 %v1684, %v1705
    %v1714 = vsub.f32 %v1687, %v1706
    %v1715 = vsub.f32 %v1690, %v1707
    %v1716 = vadd.f32 %v1708, %v1699
    %v1717 = vadd.f32 %v1709, %v1699
    %v1718 = vadd.f32 %v1710, %v1699
    %v1719 = vadd.f32 %v1711, %v1699
    %v1720 = vadd.f32 %v1712, %v1699
    %v1721 = vadd.f32 %v1713, %v1699
    %v1722 = vadd.f32 %v1714, %v1699
    %v1723 = vadd.f32 %v1715, %v1699
    %v1724 = vmax.f32 %v1716, 0.0
    %v1725 = vmax.f32 %v1717, 0.0
    %v1726 = vmax.f32 %v1718, 0.0
    %v1727 = vmax.f32 %v1719, 0.0
    %v1728 = vmax.f32 %v1720, 0.0
    %v1729 = vmax.f32 %v1721, 0.0
    %v1730 = vmax.f32 %v1722, 0.0
    %v1731 = vmax.f32 %v1723, 0.0
    %v1732 = vsel %vm311, %v1724, inf
    %1733 = vmin.xlane.f32.xlu0 %v1732
    %v1734 = vpop.xlane.xlu0 %1733
    %v1735 = vsel %vm311, %v1725, inf
    %1736 = vmin.xlane.f32.xlu0 %v1735
    %v1737 = vpop.xlane.xlu0 %1736
    %v1738 = vsel %vm311, %v1726, inf
    %1739 = vmin.xlane.f32.xlu0 %v1738
    %v1740 = vpop.xlane.xlu0 %1739
    %v1741 = vsel %vm311, %v1727, inf
    %1742 = vmin.xlane.f32.xlu0 %v1741
    %v1743 = vpop.xlane.xlu0 %1742
    %v1744 = vsel %vm311, %v1728, inf
    %1745 = vmin.xlane.f32.xlu0 %v1744
    %v1746 = vpop.xlane.xlu0 %1745
    %v1747 = vsel %vm311, %v1729, inf
    %1748 = vmin.xlane.f32.xlu0 %v1747
    %v1749 = vpop.xlane.xlu0 %1748
    %v1750 = vsel %vm311, %v1730, inf
    %1751 = vmin.xlane.f32.xlu0 %v1750
    %v1752 = vpop.xlane.xlu0 %1751
    %v1753 = vsel %vm311, %v1731, inf
    %1754 = vmin.xlane.f32.xlu0 %v1753
    %v1755 = vpop.xlane.xlu0 %1754
    %v1756 = vmin.f32 %v1732, %v1744
    %v1757 = vmin.f32 %v1735, %v1747
    %v1758 = vmin.f32 %v1738, %v1750
    %v1759 = vmin.f32 %v1741, %v1753
    %v1760 = vmin.f32 %v1756, %v1757
    %v1761 = vmin.f32 %v1758, %v1759
    %v1762 = vmin.f32 %v1760, %v1761
    %v1763 = vrot.slane %v1762, 4
    %v1764 = vmin.f32 %v1762, %v1763
    %v1765 = vrot.slane %v1764, 2
    %v1766 = vmin.f32 %v1764, %v1765
    %v1767 = vrot.slane %v1766, 1
    %v1768 = vmin.f32 %v1766, %v1767
    %v1769 = vadd.f32 %v1734, %v1737
    %v1770 = vadd.f32 %v1769, %v1740
    %v1771 = vadd.f32 %v1770, %v1743
    %v1772 = vadd.f32 %v1771, %v1746
    %v1773 = vadd.f32 %v1772, %v1749
    %v1774 = vadd.f32 %v1773, %v1752
    %v1775 = vadd.f32 %v1774, %v1755
    %v1776 = vrot.slane %v1775, 4
    %v1777 = vadd.f32 %v1775, %v1776
    %v1778 = vrot.slane %v1777, 2
    %v1779 = vadd.f32 %v1777, %v1778
    %v1780 = vrot.slane %v1779, 1
    %v1781 = vadd.f32 %v1779, %v1780
    %v1782 = vrcp.pop 64.0
    %v1783 = vmul.f32 64.0, %v1782
    %v1784 = vsub.f32 1.0, %v1783
    %v1785 = vmul.f32 %v1782, %v1784
    %v1786 = vadd.f32 %v1782, %v1785
    %vm1787 = vweird.f32 %v1782
    %v1788 = vsel %vm1787, %v1782, %v1786
    %v1789 = vmul.f32 %v1781, %v1788
    %v1790 = vsel %vm311, %v1768, 0.0
    %1791 = vadd.xlane.f32.xlu0 %v1790
    %v1792 = vpop.xlane.xlu0 %1791
    %v1793 = vmul.f32 %v1792, %v1788
    %v1794 = vadd.f32 %v1789, %v1793
    %v1795 = vadd.f32 %v1794, 0.0
    %1804 = vrot.lane.b32.xlu0 %v1276, 127
    %v1805 = vpop.permute.xlu0 %1804
    %1806 = vrot.lane.b32.xlu0 %v1279, 127
    %v1807 = vpop.permute.xlu0 %1806
    %1808 = vrot.lane.b32.xlu0 %v1282, 127
    %v1809 = vpop.permute.xlu0 %1808
    %1810 = vrot.lane.b32.xlu0 %v1285, 127
    %v1811 = vpop.permute.xlu0 %1810
    %1812 = vrot.lane.b32.xlu0 %v1288, 127
    %v1813 = vpop.permute.xlu0 %1812
    %1814 = vrot.lane.b32.xlu0 %v1291, 127
    %v1815 = vpop.permute.xlu0 %1814
    %1816 = vrot.lane.b32.xlu0 %v1294, 127
    %v1817 = vpop.permute.xlu0 %1816
    %1818 = vrot.lane.b32.xlu0 %v1297, 127
    %v1819 = vpop.permute.xlu0 %1818
    %1828 = vst.msk [vmem:[#allocation3] sm:$0xff] %vm489, %v1805
    %1829 = vst.msk [vmem:[#allocation3 + $0x8] sm:$0xff] %vm489, %v1807
    %1830 = vst.msk [vmem:[#allocation3 + $0x10] sm:$0xff] %vm489, %v1809
    %1831 = vst.msk [vmem:[#allocation3 + $0x18] sm:$0xff] %vm489, %v1811
    %1832 = vst.msk [vmem:[#allocation3 + $0x20] sm:$0xff] %vm489, %v1813
    %1833 = vst.msk [vmem:[#allocation3 + $0x28] sm:$0xff] %vm489, %v1815
    %1834 = vst.msk [vmem:[#allocation3 + $0x30] sm:$0xff] %vm489, %v1817
    %1835 = vst.msk [vmem:[#allocation3 + $0x38] sm:$0xff] %vm489, %v1819
    %1836 = vst.msk [vmem:[#allocation3] sm:$0xff] %vm689, %v1373
    %1837 = vst.msk [vmem:[#allocation3 + $0x8] sm:$0xff] %vm689, %v1376
    %1838 = vst.msk [vmem:[#allocation3 + $0x10] sm:$0xff] %vm689, %v1379
    %1839 = vst.msk [vmem:[#allocation3 + $0x18] sm:$0xff] %vm689, %v1382
    %1840 = vst.msk [vmem:[#allocation3 + $0x20] sm:$0xff] %vm689, %v1385
    %1841 = vst.msk [vmem:[#allocation3 + $0x28] sm:$0xff] %vm689, %v1388
    %1842 = vst.msk [vmem:[#allocation3 + $0x30] sm:$0xff] %vm689, %v1391
    %1843 = vst.msk [vmem:[#allocation3 + $0x38] sm:$0xff] %vm689, %v1394
    %1844 = vrot.lane.b32.xlu0 %v1470, 1
    %v1845 = vpop.permute.xlu0 %1844
    %1846 = vrot.lane.b32.xlu0 %v1473, 1
    %v1847 = vpop.permute.xlu0 %1846
    %1848 = vrot.lane.b32.xlu0 %v1476, 1
    %v1849 = vpop.permute.xlu0 %1848
    %1850 = vrot.lane.b32.xlu0 %v1479, 1
    %v1851 = vpop.permute.xlu0 %1850
    %1852 = vrot.lane.b32.xlu0 %v1482, 1
    %v1853 = vpop.permute.xlu0 %1852
    %1854 = vrot.lane.b32.xlu0 %v1485, 1
    %v1855 = vpop.permute.xlu0 %1854
    %1856 = vrot.lane.b32.xlu0 %v1488, 1
    %v1857 = vpop.permute.xlu0 %1856
    %1858 = vrot.lane.b32.xlu0 %v1491, 1
    %v1859 = vpop.permute.xlu0 %1858
    %1868 = vst.msk [vmem:[#allocation3] sm:$0xff] %vm1573, %v1845
    %1869 = vst.msk [vmem:[#allocation3 + $0x8] sm:$0xff] %vm1573, %v1847
    %1870 = vst.msk [vmem:[#allocation3 + $0x10] sm:$0xff] %vm1573, %v1849
    %1871 = vst.msk [vmem:[#allocation3 + $0x18] sm:$0xff] %vm1573, %v1851
    %1872 = vst.msk [vmem:[#allocation3 + $0x20] sm:$0xff] %vm1573, %v1853
    %1873 = vst.msk [vmem:[#allocation3 + $0x28] sm:$0xff] %vm1573, %v1855
    %1874 = vst.msk [vmem:[#allocation3 + $0x30] sm:$0xff] %vm1573, %v1857
    %1875 = vst.msk [vmem:[#allocation3 + $0x38] sm:$0xff] %vm1573, %v1859
    %v1876 = vld [vmem:[#allocation3] sm:$0xff]
    %v1877 = vld [vmem:[#allocation3 + $0x8] sm:$0xff]
    %v1878 = vld [vmem:[#allocation3 + $0x10] sm:$0xff]
    %v1879 = vld [vmem:[#allocation3 + $0x18] sm:$0xff]
    %v1880 = vld [vmem:[#allocation3 + $0x20] sm:$0xff]
    %v1881 = vld [vmem:[#allocation3 + $0x28] sm:$0xff]
    %v1882 = vld [vmem:[#allocation3 + $0x30] sm:$0xff]
    %v1883 = vld [vmem:[#allocation3 + $0x38] sm:$0xff]
    %v1884 = vld [vmem:[%s506] sm:$0x7]
    %v1886 = vsel %vm153, %v1876, 0
    %v1889 = vsel %vm153, %v1877, 0
    %v1892 = vsel %vm153, %v1878, 0
    %v1895 = vsel %vm153, %v1879, 0
    %v1898 = vsel %vm153, %v1880, 0
    %v1901 = vsel %vm153, %v1881, 0
    %v1904 = vsel %vm153, %v1882, 0
    %v1907 = vsel %vm153, %v1883, 0
    %v1910 = vsel %vm178, %v1884, 0
    %1912 = vmatpush.msra.mxu0 0.0
    %1913 = vmatpush.msra.mxu0 0.0
    %1914 = vmatpush.msra.mxu0 0.0
    %1915 = vmatpush.msra.mxu0 0.0
    %1916 = vmatpush.msra.mxu0 0.0
    %1917 = vmatpush.msra.mxu0 0.0
    %1918 = vmatpush.msra.mxu0 0.0
    %1919 = vmatpush.msra.mxu0 0.0
    %1920 = vmatpush.msra.mxu0 0.0
    %1921 = vmatpush.msra.mxu0 0.0
    %1922 = vmatpush.msra.mxu0 0.0
    %1923 = vmatpush.msra.mxu0 0.0
    %1924 = vmatpush.msra.mxu0 0.0
    %1925 = vmatpush.msra.mxu0 0.0
    %1926 = vmatpush.msra.mxu0 0.0
    %1927 = vmatpush.msra.mxu0 %v1910
    %1928 = vmatmul.f32.gmra.mxu0 %v1886
    %v1929 = vpop.f32.mrf.mxu0
    %v1930 = vadd.f32 0.0, %v1929
    %1931 = vmatmul.f32.gmra.mxu0 %v1889
    %v1932 = vpop.f32.mrf.mxu0
    %v1933 = vadd.f32 0.0, %v1932
    %1934 = vmatmul.f32.gmra.mxu0 %v1892
    %v1935 = vpop.f32.mrf.mxu0
    %v1936 = vadd.f32 0.0, %v1935
    %1937 = vmatmul.f32.gmra.mxu0 %v1895
    %v1938 = vpop.f32.mrf.mxu0
    %v1939 = vadd.f32 0.0, %v1938
    %1940 = vmatmul.f32.gmra.mxu0 %v1898
    %v1941 = vpop.f32.mrf.mxu0
    %v1942 = vadd.f32 0.0, %v1941
    %1943 = vmatmul.f32.gmra.mxu0 %v1901
    %v1944 = vpop.f32.mrf.mxu0
    %v1945 = vadd.f32 0.0, %v1944
    %1946 = vmatmul.f32.gmra.mxu0 %v1904
    %v1947 = vpop.f32.mrf.mxu0
    %v1948 = vadd.f32 0.0, %v1947
    %1949 = vmatmul.f32.gmra.mxu0 %v1907
    %v1950 = vpop.f32.mrf.mxu0
    %v1951 = vadd.f32 0.0, %v1950
    %1952 = vdwg.mxu0
    %v1953 = vmul.f32 %v1876, %v1876
    %v1954 = vmul.f32 %v1877, %v1877
    %v1955 = vmul.f32 %v1878, %v1878
    %v1956 = vmul.f32 %v1879, %v1879
    %v1957 = vmul.f32 %v1880, %v1880
    %v1958 = vmul.f32 %v1881, %v1881
    %v1959 = vmul.f32 %v1882, %v1882
    %v1960 = vmul.f32 %v1883, %v1883
    %v1961 = vsel %vm153, %v1953, 0.0
    %1962 = vadd.xlane.f32.xlu0 %v1961
    %v1963 = vpop.xlane.xlu0 %1962
    %v1964 = vsel %vm153, %v1954, 0.0
    %1965 = vadd.xlane.f32.xlu0 %v1964
    %v1966 = vpop.xlane.xlu0 %1965
    %v1967 = vsel %vm153, %v1955, 0.0
    %1968 = vadd.xlane.f32.xlu0 %v1967
    %v1969 = vpop.xlane.xlu0 %1968
    %v1970 = vsel %vm153, %v1956, 0.0
    %1971 = vadd.xlane.f32.xlu0 %v1970
    %v1972 = vpop.xlane.xlu0 %1971
    %v1973 = vsel %vm153, %v1957, 0.0
    %1974 = vadd.xlane.f32.xlu0 %v1973
    %v1975 = vpop.xlane.xlu0 %1974
    %v1976 = vsel %vm153, %v1958, 0.0
    %1977 = vadd.xlane.f32.xlu0 %v1976
    %v1978 = vpop.xlane.xlu0 %1977
    %v1979 = vsel %vm153, %v1959, 0.0
    %1980 = vadd.xlane.f32.xlu0 %v1979
    %v1981 = vpop.xlane.xlu0 %1980
    %v1982 = vsel %vm153, %v1960, 0.0
    %1983 = vadd.xlane.f32.xlu0 %v1982
    %v1984 = vpop.xlane.xlu0 %1983
    %v1985 = vmul.f32 %v1884, %v1884
    %v1986 = vsel %vm1692, %v1985, 0.0
    %v1987 = vrot.slane %v1986, 4
    %v1988 = vadd.f32 %v1986, %v1987
    %v1989 = vrot.slane %v1988, 2
    %v1990 = vadd.f32 %v1988, %v1989
    %v1991 = vrot.slane %v1990, 1
    %v1992 = vadd.f32 %v1990, %v1991
    %v1993 = vmul.f32 %v1930, 2.0
    %v1994 = vmul.f32 %v1933, 2.0
    %v1995 = vmul.f32 %v1936, 2.0
    %v1996 = vmul.f32 %v1939, 2.0
    %v1997 = vmul.f32 %v1942, 2.0
    %v1998 = vmul.f32 %v1945, 2.0
    %v1999 = vmul.f32 %v1948, 2.0
    %v2000 = vmul.f32 %v1951, 2.0
    %v2001 = vsub.f32 %v1963, %v1993
    %v2002 = vsub.f32 %v1966, %v1994
    %v2003 = vsub.f32 %v1969, %v1995
    %v2004 = vsub.f32 %v1972, %v1996
    %v2005 = vsub.f32 %v1975, %v1997
    %v2006 = vsub.f32 %v1978, %v1998
    %v2007 = vsub.f32 %v1981, %v1999
    %v2008 = vsub.f32 %v1984, %v2000
    %v2009 = vadd.f32 %v2001, %v1992
    %v2010 = vadd.f32 %v2002, %v1992
    %v2011 = vadd.f32 %v2003, %v1992
    %v2012 = vadd.f32 %v2004, %v1992
    %v2013 = vadd.f32 %v2005, %v1992
    %v2014 = vadd.f32 %v2006, %v1992
    %v2015 = vadd.f32 %v2007, %v1992
    %v2016 = vadd.f32 %v2008, %v1992
    %v2017 = vmax.f32 %v2009, 0.0
    %v2018 = vmax.f32 %v2010, 0.0
    %v2019 = vmax.f32 %v2011, 0.0
    %v2020 = vmax.f32 %v2012, 0.0
    %v2021 = vmax.f32 %v2013, 0.0
    %v2022 = vmax.f32 %v2014, 0.0
    %v2023 = vmax.f32 %v2015, 0.0
    %v2024 = vmax.f32 %v2016, 0.0
    %v2025 = vsel %vm311, %v2017, inf
    %2026 = vmin.xlane.f32.xlu0 %v2025
    %v2027 = vpop.xlane.xlu0 %2026
    %v2028 = vsel %vm311, %v2018, inf
    %2029 = vmin.xlane.f32.xlu0 %v2028
    %v2030 = vpop.xlane.xlu0 %2029
    %v2031 = vsel %vm311, %v2019, inf
    %2032 = vmin.xlane.f32.xlu0 %v2031
    %v2033 = vpop.xlane.xlu0 %2032
    %v2034 = vsel %vm311, %v2020, inf
    %2035 = vmin.xlane.f32.xlu0 %v2034
    %v2036 = vpop.xlane.xlu0 %2035
    %v2037 = vsel %vm311, %v2021, inf
    %2038 = vmin.xlane.f32.xlu0 %v2037
    %v2039 = vpop.xlane.xlu0 %2038
    %v2040 = vsel %vm311, %v2022, inf
    %2041 = vmin.xlane.f32.xlu0 %v2040
    %v2042 = vpop.xlane.xlu0 %2041
    %v2043 = vsel %vm311, %v2023, inf
    %2044 = vmin.xlane.f32.xlu0 %v2043
    %v2045 = vpop.xlane.xlu0 %2044
    %v2046 = vsel %vm311, %v2024, inf
    %2047 = vmin.xlane.f32.xlu0 %v2046
    %v2048 = vpop.xlane.xlu0 %2047
    %v2049 = vmin.f32 %v2025, %v2037
    %v2050 = vmin.f32 %v2028, %v2040
    %v2051 = vmin.f32 %v2031, %v2043
    %v2052 = vmin.f32 %v2034, %v2046
    %v2053 = vmin.f32 %v2049, %v2050
    %v2054 = vmin.f32 %v2051, %v2052
    %v2055 = vmin.f32 %v2053, %v2054
    %v2056 = vrot.slane %v2055, 4
    %v2057 = vmin.f32 %v2055, %v2056
    %v2058 = vrot.slane %v2057, 2
    %v2059 = vmin.f32 %v2057, %v2058
    %v2060 = vrot.slane %v2059, 1
    %v2061 = vmin.f32 %v2059, %v2060
    %v2062 = vadd.f32 %v2027, %v2030
    %v2063 = vadd.f32 %v2062, %v2033
    %v2064 = vadd.f32 %v2063, %v2036
    %v2065 = vadd.f32 %v2064, %v2039
    %v2066 = vadd.f32 %v2065, %v2042
    %v2067 = vadd.f32 %v2066, %v2045
    %v2068 = vadd.f32 %v2067, %v2048
    %v2069 = vrot.slane %v2068, 4
    %v2070 = vadd.f32 %v2068, %v2069
    %v2071 = vrot.slane %v2070, 2
    %v2072 = vadd.f32 %v2070, %v2071
    %v2073 = vrot.slane %v2072, 1
    %v2074 = vadd.f32 %v2072, %v2073
    %v2075 = vmul.f32 %v2074, %v1788
    %v2076 = vsel %vm311, %v2061, 0.0
    %2077 = vadd.xlane.f32.xlu0 %v2076
    %v2078 = vpop.xlane.xlu0 %2077
    %v2079 = vmul.f32 %v2078, %v1788
    %v2080 = vadd.f32 %v2075, %v2079
    %v2081 = vadd.f32 %v1795, %v2080
    %v2082 = vmul.f32 %v768, %v768
    %v2083 = vmul.f32 %v771, %v771
    %v2084 = vmul.f32 %v774, %v774
    %v2085 = vmul.f32 %v777, %v777
    %v2086 = vadd.f32 %v896, %v2082
    %v2087 = vadd.f32 %v897, %v2083
    %v2088 = vadd.f32 %v898, %v2084
    %v2089 = vadd.f32 %v899, %v2085
    %v2090 = vlog2.pop %v896
    %v2091 = vmul.f32 %v2090, 0.6931472
    %v2092 = vlog2.pop %v897
    %v2093 = vmul.f32 %v2092, 0.6931472
    %v2094 = vlog2.pop %v898
    %v2095 = vmul.f32 %v2094, 0.6931472
    %v2096 = vlog2.pop %v899
    %v2097 = vmul.f32 %v2096, 0.6931472
    %v2098 = vsub.f32 %v2086, %v2091
    %v2099 = vsub.f32 %v2087, %v2093
    %v2100 = vsub.f32 %v2088, %v2095
    %v2101 = vsub.f32 %v2089, %v2097
    %v2102 = vsub.f32 %v2098, 1.0
    %v2103 = vsub.f32 %v2099, 1.0
    %v2104 = vsub.f32 %v2100, 1.0
    %v2105 = vsub.f32 %v2101, 1.0
    %v2106 = vmul.f32 %v2102, 0.5
    %v2107 = vmul.f32 %v2103, 0.5
    %v2108 = vmul.f32 %v2104, 0.5
    %v2109 = vmul.f32 %v2105, 0.5
    %vm2110 = vcmask 15360
    %v2111 = vsel %vm2110, %v2106, 0.0
    %v2112 = vsel %vm2110, %v2107, 0.0
    %v2113 = vadd.f32 %v2111, %v2112
    %v2114 = vsel %vm2110, %v2108, 0.0
    %v2115 = vadd.f32 %v2113, %v2114
    %v2116 = vsel %vm2110, %v2109, 0.0
    %v2117 = vadd.f32 %v2115, %v2116
    %v2118 = vrot.slane %v2117, 4
    %v2119 = vadd.f32 %v2117, %v2118
    %v2120 = vrot.slane %v2119, 2
    %v2121 = vadd.f32 %v2119, %v2120
    %v2122 = vrot.slane %v2121, 1
    %v2123 = vadd.f32 %v2121, %v2122
    %v2124 = vsel %vm2110, %v2123, 0.0
    %2125 = vadd.xlane.f32.xlu0 %v2124
    %v2126 = vpop.xlane.xlu0 %2125
    %v2127 = vrcp.pop 2.0
    %v2128 = vmul.f32 2.0, %v2127
    %v2129 = vsub.f32 1.0, %v2128
    %v2130 = vmul.f32 %v2127, %v2129
    %v2131 = vadd.f32 %v2127, %v2130
    %vm2132 = vweird.f32 %v2127
    %v2133 = vsel %vm2132, %v2127, %v2131
    %v2134 = vmul.f32 %v2126, %v2133
    %v2135 = vmul.f32 %v2081, 0.5
    %vm2136 = vcmask 0
    %2137 = vst.msk [vmem:[#allocation4] sm:$0x1] %vm2136, %v2135
    %2138 = vst.msk [vmem:[#allocation6] sm:$0x1] %vm2136, %v2134
    %v2139 = vadd.f32 %v2135, %v2134
    %2140 = vst.msk [vmem:[#allocation8] sm:$0x1] %vm2136, %v2139
    // Predicated region
    $region74: #{vae_forward.1} parent=1 // pred_check
      _
    $region75: #{vae_forward.1} parent=1 // pred_check_branch
      %2142 = sbr.rel (0) target = $region77
    $region76: #{vae_forward.1} parent=1 // pred_region
      %2144 = vsyncadd [#allocation5], 0
      %s2146 = sshll.u32 [#allocation4], 4
      %s2147 = int_to_ptr.vmem [resolvable:$true] %s2146
      %s2148 = sshll.u32 %s18, 4
      %s2149 = int_to_ptr.hbm [resolvable:$true] %s2148
      %2151 = dma.vmem_to_hbm [thread:$0]  %s2147, 16, %s2149, [#allocation5]
    $region77: #{vae_forward.1} parent=1 // pred_fallthru
      _
    // Predicated region
    $region78: #{vae_forward.1} parent=1 // pred_check
      _
    $region79: #{vae_forward.1} parent=1 // pred_check_branch
      %2153 = sbr.rel (0) target = $region81
    $region80: #{vae_forward.1} parent=1 // pred_region
      %2155 = vsyncadd [#allocation7], 0
      %s2157 = sshll.u32 [#allocation6], 4
      %s2158 = int_to_ptr.vmem [resolvable:$true] %s2157
      %s2159 = sshll.u32 %s19, 4
      %s2160 = int_to_ptr.hbm [resolvable:$true] %s2159
      %2162 = dma.vmem_to_hbm [thread:$0]  %s2158, 16, %s2160, [#allocation7]
    $region81: #{vae_forward.1} parent=1 // pred_fallthru
      _
    // Predicated region
    $region82: #{vae_forward.1} parent=1 // pred_check
      _
    $region83: #{vae_forward.1} parent=1 // pred_check_branch
      %2164 = sbr.rel (0) target = $region85
    $region84: #{vae_forward.1} parent=1 // pred_region
      %2166 = vsyncadd [#allocation7], 0
      %s2168 = sshll.u32 [#allocation8], 4
      %s2169 = int_to_ptr.vmem [resolvable:$true] %s2168
      %s2170 = sshll.u32 %s20, 4
      %s2171 = int_to_ptr.hbm [resolvable:$true] %s2170
      %2173 = dma.vmem_to_hbm [thread:$0]  %s2169, 16, %s2171, [#allocation7]
    $region85: #{vae_forward.1} parent=1 // pred_fallthru
      _
    // Predicated region
    $region86: #{vae_forward.1} parent=1 // pred_check
      _
    $region87: #{vae_forward.1} parent=1 // pred_check_branch
      %2175 = sbr.rel (0) target = $region89
    $region88: #{vae_forward.1} parent=1 // pred_region
      %2177 = dma.done [#allocation5], 16
    $region89: #{vae_forward.1} parent=1 // pred_fallthru
      _
    // Predicated region
    $region90: #{vae_forward.1} parent=1 // pred_check
      _
    $region91: #{vae_forward.1} parent=1 // pred_check_branch
      %2179 = sbr.rel (0) target = $region93
    $region92: #{vae_forward.1} parent=1 // pred_region
      %2181 = dma.done [#allocation7], 16
    $region93: #{vae_forward.1} parent=1 // pred_fallthru
      _
    // Predicated region
    $region94: #{vae_forward.1} parent=1 // pred_check
      _
    $region95: #{vae_forward.1} parent=1 // pred_check_branch
      %2183 = sbr.rel (0) target = $region97
    $region96: #{vae_forward.1} parent=1 // pred_region
      %2185 = dma.done [#allocation7], 16
    $region97: #{vae_forward.1} parent=1 // pred_fallthru
      _
    %2186 = vsyncpa [#allocation5], 1
    %2187 = vsyncpa [#allocation7], 1

</llo_original>
